<compile_context>
chip_gen: v5e
topology: v5e:2x2
jax: 0.10.0
libtpu: 0.0.40
codegen_flags: <defaults>
</compile_context>

<pallas_src>
import functools

import jax
import jax.numpy as jnp
from jax.experimental import pallas as pl
from jax.experimental.pallas import tpu as pltpu

EPS = 1e-5                      # nn.BatchNorm2d default eps
LANE = 128                      # lane-dense channel padding
TM_MAX = 256                    # M-tile rows at real sizes (multiple of 16)
VMEM_LIMIT_BYTES = 48 * 1024 * 1024   # > 32 MiB scoped default, < 64 MiB v7x physical


# --------------------------- Pallas kernels -----------------------------------

def conv_stats_kernel(p_ref, w_ref, y_ref, st_ref):
    """Phase 1: y = patches @ w (bf16 in, f32 acc) + per-tile BN partial stats."""
    y = jnp.dot(p_ref[...], w_ref[...], preferred_element_type=jnp.float32)
    y_ref[...] = y
    s = jnp.sum(y, axis=0, keepdims=True)          # (1, N) partial sum (XLU)
    ss = jnp.sum(y * y, axis=0, keepdims=True)     # (1, N) partial sum of squares
    st_ref[...] = jnp.concatenate(
        [s, ss, jnp.zeros((6, s.shape[-1]), jnp.float32)], axis=0)


def dual_conv_stats_kernel(p2_ref, w2_ref, pe_ref, we_ref,
                           y2_ref, ye_ref, st2_ref, ste_ref):
    """Phase 1 for conv2 and the 1x1 shortcut conv, fused in one kernel."""
    for p_ref, w_ref, y_ref, st_ref in ((p2_ref, w2_ref, y2_ref, st2_ref),
                                        (pe_ref, we_ref, ye_ref, ste_ref)):
        y = jnp.dot(p_ref[...], w_ref[...], preferred_element_type=jnp.float32)
        y_ref[...] = y
        s = jnp.sum(y, axis=0, keepdims=True)
        ss = jnp.sum(y * y, axis=0, keepdims=True)
        st_ref[...] = jnp.concatenate(
            [s, ss, jnp.zeros((6, s.shape[-1]), jnp.float32)], axis=0)


def bn_act_kernel(y_ref, a_ref, b_ref, o_ref, *, relu):
    """Phase 2: folded BN (one FMA per element) + optional ReLU."""
    o = y_ref[...] * a_ref[...] + b_ref[...]
    if relu:
        o = jnp.maximum(o, 0.0)
    o_ref[...] = o.astype(o_ref.dtype)


def dual_bn_add_kernel(y2_ref, ye_ref, a2_ref, b2_ref, ae_ref, be_ref, o_ref):
    """Phase 2: folded BN on both branches + residual add, one pass."""
    o_ref[...] = (y2_ref[...] * a2_ref[...] + b2_ref[...]
                  + ye_ref[...] * ae_ref[...] + be_ref[...])


# --------------------------- pallas_call wrappers ------------------------------

def _params():
    return pltpu.CompilerParams(dimension_semantics=("parallel",),
                                vmem_limit_bytes=VMEM_LIMIT_BYTES)


def _conv_stats_call(patches, w, tm):
    mpad, k = patches.shape
    n = w.shape[1]
    nmt = mpad // tm
    es = patches.dtype.itemsize
    cost = pl.CostEstimate(
        flops=int(2 * mpad * k * n + 3 * mpad * n), transcendentals=0,
        bytes_accessed=int(mpad * k * es + k * n * es
                           + mpad * n * 4 + nmt * 8 * n * 4))
    return pl.pallas_call(
        conv_stats_kernel,
        out_shape=(jax.ShapeDtypeStruct((mpad, n), jnp.float32),
                   jax.ShapeDtypeStruct((nmt * 8, n), jnp.float32)),
        grid=(nmt,),
        in_specs=[pl.BlockSpec((tm, k), lambda i: (i, 0)),
                  pl.BlockSpec((k, n), lambda i: (0, 0))],
        out_specs=(pl.BlockSpec((tm, n), lambda i: (i, 0)),
                   pl.BlockSpec((8, n), lambda i: (i, 0))),
        compiler_params=_params(),
        cost_estimate=cost,
    )(patches, w)


def _dual_conv_stats_call(p2, w2, pe, we, tm):
    mpad, k2 = p2.shape
    ke = pe.shape[1]
    n = w2.shape[1]
    nmt = mpad // tm
    es = p2.dtype.itemsize
    cost = pl.CostEstimate(
        flops=int(2 * mpad * (k2 + ke) * n + 6 * mpad * n), transcendentals=0,
        bytes_accessed=int((mpad * k2 + k2 * n + mpad * ke + ke * n) * es
                           + 2 * mpad * n * 4 + 2 * nmt * 8 * n * 4))
    return pl.pallas_call(
        dual_conv_stats_kernel,
        out_shape=(jax.ShapeDtypeStruct((mpad, n), jnp.float32),
                   jax.ShapeDtypeStruct((mpad, n), jnp.float32),
                   jax.ShapeDtypeStruct((nmt * 8, n), jnp.float32),
                   jax.ShapeDtypeStruct((nmt * 8, n), jnp.float32)),
        grid=(nmt,),
        in_specs=[pl.BlockSpec((tm, k2), lambda i: (i, 0)),
                  pl.BlockSpec((k2, n), lambda i: (0, 0)),
                  pl.BlockSpec((tm, ke), lambda i: (i, 0)),
                  pl.BlockSpec((ke, n), lambda i: (0, 0))],
        out_specs=(pl.BlockSpec((tm, n), lambda i: (i, 0)),
                   pl.BlockSpec((tm, n), lambda i: (i, 0)),
                   pl.BlockSpec((8, n), lambda i: (i, 0)),
                   pl.BlockSpec((8, n), lambda i: (i, 0))),
        compiler_params=_params(),
        cost_estimate=cost,
    )(p2, w2, pe, we)


def _bn_act_call(y, a, b, tm, *, relu, out_dtype):
    mpad, n = y.shape
    nmt = mpad // tm
    cost = pl.CostEstimate(
        flops=int(2 * mpad * n), transcendentals=0,
        bytes_accessed=int(mpad * n * 4 + 2 * n * 4
                           + mpad * n * jnp.dtype(out_dtype).itemsize))
    return pl.pallas_call(
        functools.partial(bn_act_kernel, relu=relu),
        out_shape=jax.ShapeDtypeStruct((mpad, n), out_dtype),
        grid=(nmt,),
        in_specs=[pl.BlockSpec((tm, n), lambda i: (i, 0)),
                  pl.BlockSpec((1, n), lambda i: (0, 0)),
                  pl.BlockSpec((1, n), lambda i: (0, 0))],
        out_specs=pl.BlockSpec((tm, n), lambda i: (i, 0)),
        compiler_params=_params(),
        cost_estimate=cost,
    )(y, a, b)


def _dual_bn_add_call(y2, ye, a2, b2, ae, be, tm):
    mpad, n = y2.shape
    nmt = mpad // tm
    cost = pl.CostEstimate(flops=int(5 * mpad * n), transcendentals=0,
                           bytes_accessed=int(3 * mpad * n * 4 + 4 * n * 4))
    return pl.pallas_call(
        dual_bn_add_kernel,
        out_shape=jax.ShapeDtypeStruct((mpad, n), jnp.float32),
        grid=(nmt,),
        in_specs=[pl.BlockSpec((tm, n), lambda i: (i, 0)),
                  pl.BlockSpec((tm, n), lambda i: (i, 0)),
                  pl.BlockSpec((1, n), lambda i: (0, 0)),
                  pl.BlockSpec((1, n), lambda i: (0, 0)),
                  pl.BlockSpec((1, n), lambda i: (0, 0)),
                  pl.BlockSpec((1, n), lambda i: (0, 0))],
        out_specs=pl.BlockSpec((tm, n), lambda i: (i, 0)),
        compiler_params=_params(),
        cost_estimate=cost,
    )(y2, ye, a2, b2, ae, be)


# --------------------------- host glue (channels-last) --------------------------

def _round_up(x, m):
    return (x + m - 1) // m * m


def _tile_m(m):
    """M-tile size: 256 rows at real sizes; force >=2 tiles at tiny sizes so the
    cross-tile BN-stat reduction is exercised.  Always a multiple of 16 (bf16)."""
    if m >= 2 * TM_MAX:
        tm = TM_MAX
    else:
        tm = _round_up(max(m // 2, 8), 16)
    return tm, _round_up(m, tm)


def _pad_rows(p, mpad):
    m = p.shape[0]
    return p if m == mpad else jnp.pad(p, ((0, mpad - m), (0, 0)))


def _pad_vec(v, n):
    return jnp.pad(v.astype(jnp.float32), (0, n - v.shape[0]))


def im2col_nhwc(x, k, stride, pad):
    """x: [B,H,W,C] -> ([M, k*k*C], M, Ho, Wo).  Column order = (tap, channel)."""
    # TODO(synk): at real sizes do this in-kernel from DMA'd halo tiles instead.
    B, _, _, C = x.shape
    if pad:
        x = jnp.pad(x, ((0, 0), (pad, pad), (pad, pad), (0, 0)))
    Hp, Wp = x.shape[1], x.shape[2]
    Ho = (Hp - k) // stride + 1
    Wo = (Wp - k) // stride + 1
    cols = []
    for i in range(k):
        for j in range(k):
            cols.append(x[:, i:i + stride * (Ho - 1) + 1:stride,
                            j:j + stride * (Wo - 1) + 1:stride, :])
    p = jnp.stack(cols, axis=3).reshape(B * Ho * Wo, k * k * C)
    return p, B * Ho * Wo, Ho, Wo


def strided_sample_nhwc(x, stride, pad):
    """1x1-conv 'im2col': zero-pad + stride-sample, no 9x inflation."""
    if pad:
        x = jnp.pad(x, ((0, 0), (pad, pad), (pad, pad), (0, 0)))
    xs = x[:, ::stride, ::stride, :]
    B, Ho, Wo, C = xs.shape
    return xs.reshape(B * Ho * Wo, C), B * Ho * Wo, Ho, Wo


def pack_conv_weight(w, cin_pad, cout_pad):
    """OIHW [Co,Ci,kh,kw] -> [kh*kw*cin_pad, cout_pad] matmul layout, zero-padded."""
    Co, Ci, kh, kw = w.shape
    wt = jnp.transpose(w, (2, 3, 1, 0))                       # (kh, kw, Ci, Co)
    wp = jnp.zeros((kh, kw, cin_pad, cout_pad), w.dtype)
    wp = wp.at[:, :, :Ci, :Co].set(wt)
    return wp.reshape(kh * kw * cin_pad, cout_pad)


def _finalize_affine(stats, true_m, gamma, beta):
    """Reduce per-tile partial stats and fold BN into one scale+shift (f32)."""
    s = jnp.sum(stats[0::8], axis=0)
    ss = jnp.sum(stats[1::8], axis=0)
    mean = s / true_m
    var = jnp.maximum(ss / true_m - mean * mean, 0.0)   # biased var (PyTorch BN)
    a = gamma * jax.lax.rsqrt(var + EPS)
    b = beta - mean * a
    return a.reshape(1, -1), b.reshape(1, -1)


# --------------------------- forward pass --------------------------------------

def resnet_block_forward(x_nchw, p, *, stride, mxu_dtype=jnp.bfloat16):
    """Pallas implementation of ResNetBlock.forward (channel_in != channel_out)."""
    B = x_nchw.shape[0]
    Cin = x_nchw.shape[1]
    Cf = p["w2"].shape[0]
    N = LANE

    x = jnp.transpose(x_nchw, (0, 2, 3, 1))          # NHWC inside the block

    # ---- stage 1: conv1(stride, pad 0) -> BN1 -> ReLU ---------------------
    p1, m1, H1, W1 = im2col_nhwc(x, 3, stride, 0)
    tm1, mpad1 = _tile_m(m1)
    p1 = _pad_rows(p1, mpad1).astype(mxu_dtype)      # zero pad rows -> exact stats
    y1_raw, st1 = _conv_stats_call(p1, p["w1p"].astype(mxu_dtype), tm1)
    a1, b1 = _finalize_affine(st1, m1, _pad_vec(p["g1"], N), _pad_vec(p["beta1"], N))
    y1_act = _bn_act_call(y1_raw, a1, b1, tm1, relu=True, out_dtype=mxu_dtype)
    y1_act = y1_act[:m1].reshape(B, H1, W1, N)

    # ---- stage 2: conv2(1, pad 1) & 1x1 shortcut(stride, pad 1) + BNs + add -
    p2, m2, H2, W2 = im2col_nhwc(y1_act, 3, 1, 1)
    pe, me, He, We = strided_sample_nhwc(x, stride, 1)
    assert (He, We) == (H2, W2) and me == m2, "shortcut/main spatial mismatch"

    tm2, mpad2 = _tile_m(m2)
    p2 = _pad_rows(p2, mpad2).astype(mxu_dtype)
    pe = _pad_rows(pe, mpad2).astype(mxu_dtype)
    y2_raw, ye_raw, st2, ste = _dual_conv_stats_call(
        p2, p["w2p"].astype(mxu_dtype), pe, p["wep"].astype(mxu_dtype), tm2)
    a2, b2 = _finalize_affine(st2, m2, _pad_vec(p["g2"], N), _pad_vec(p["beta2"], N))
    ae, be = _finalize_affine(ste, m2, _pad_vec(p["ge"], N), _pad_vec(p["betae"], N))
    out = _dual_bn_add_call(y2_raw, ye_raw, a2, b2, ae, be, tm2)

    out = out[:m2, :Cf].reshape(B, H2, W2, Cf)
    return jnp.transpose(out, (0, 3, 1, 2))          # PyTorch-compatible NCHW


# --------------------------- params & reference --------------------------------

def init_params(key, cin, cout, cf):
    ks = jax.random.split(key, 10)
    w1 = 0.1 * jax.random.normal(ks[0], (cout, cin, 3, 3), jnp.float32)
    w2 = 0.1 * jax.random.normal(ks[4], (cf, cout, 3, 3), jnp.float32)
    we = 0.1 * jax.random.normal(ks[7], (cf, cin, 1, 1), jnp.float32)
    return {
        # raw PyTorch-layout weights (used by the pure-JAX reference)
        "w1": w1, "w2": w2, "we": we,
        "b1": 0.1 * jax.random.normal(ks[1], (cout,), jnp.float32),
        # packed + lane-padded matmul-layout weights (kernel path; packed once)
        "w1p": pack_conv_weight(w1, cin, LANE),
        "w2p": pack_conv_weight(w2, LANE, LANE),
        "wep": pack_conv_weight(we, cin, LANE),
        "g1": 1.0 + 0.1 * jax.random.normal(ks[2], (cout,), jnp.float32),
        "beta1": 0.1 * jax.random.normal(ks[3], (cout,), jnp.float32),
        "g2": 1.0 + 0.1 * jax.random.normal(ks[5], (cf,), jnp.float32),
        "beta2": 0.1 * jax.random.normal(ks[6], (cf,), jnp.float32),
        "ge": 1.0 + 0.1 * jax.random.normal(ks[8], (cf,), jnp.float32),
        "betae": 0.1 * jax.random.normal(ks[9], (cf,), jnp.float32),
    }


def _ref_conv(x, w, stride, pad):
    return jax.lax.conv_general_dilated(
        x, w, window_strides=(stride, stride), padding=[(pad, pad), (pad, pad)],
        dimension_numbers=("NCHW", "OIHW", "NCHW"))


def _ref_bn(y, g, b):
    m = jnp.mean(y, axis=(0, 2, 3), keepdims=True)
    v = jnp.mean((y - m) ** 2, axis=(0, 2, 3), keepdims=True)
    return (y - m) * jax.lax.rsqrt(v + EPS) * g[None, :, None, None] + b[None, :, None, None]


def ref_forward(x, p, stride):
    # Faithful to PyTorch: conv1 bias IS added here (training-mode BN cancels it,
    # which the kernel path exploits by dropping the bias).
    y1 = _ref_conv(x, p["w1"], stride, 0) + p["b1"][None, :, None, None]
    y1 = jnp.maximum(_ref_bn(y1, p["g1"], p["beta1"]), 0.0)
    y2 = _ref_bn(_ref_conv(y1, p["w2"], 1, 1), p["g2"], p["beta2"])
    ye = _ref_bn(_ref_conv(x, p["we"], stride, 1), p["ge"], p["betae"])
    return y2 + ye


if __name__ == "__main__":
    key = jax.random.PRNGKey(0)
    kx, kp = jax.random.split(key)

    # channel_in=4 != channel_out=8 -> the conv shortcut is active.
    # H=W=16 with stride=6 makes both branches produce 3x3 spatial outputs
    # (the module's k=1/pad=1 shortcut only matches the main path for such combos).
    B, Cin, Cout, Cf, H, W, stride = 2, 4, 8, 8, 16, 16, 6

    x = jax.random.normal(kx, (B, Cin, H, W), jnp.float32)
    params = init_params(kp, Cin, Cout, Cf)
    ref = ref_forward(x, params, stride)

    # strict f32 verification path
    fwd_f32 = jax.jit(functools.partial(resnet_block_forward,
                                        stride=stride, mxu_dtype=jnp.float32))
    out32 = jax.block_until_ready(fwd_f32(x, params))
    assert out32.shape == ref.shape, (out32.shape, ref.shape)
    assert jnp.allclose(out32, ref, atol=1e-4, rtol=1e-4), \
        float(jnp.max(jnp.abs(out32 - ref)))

    # fast bf16-MXU path (f32 accumulation + f32 BN math)
    fwd_bf16 = jax.jit(functools.partial(resnet_block_forward,
                                         stride=stride, mxu_dtype=jnp.bfloat16))
    out16 = jax.block_until_ready(fwd_bf16(x, params))
    assert out16.shape == ref.shape, (out16.shape, ref.shape)
    assert jnp.allclose(out16, ref, atol=5e-2, rtol=5e-2), \
        float(jnp.max(jnp.abs(out16 - ref)))

    print("KERNEL_OK")
</pallas_src>

<mosaic_0001>
module attributes {stable_mosaic.version = 11 : i64} {
  func.func @bn_act_kernel(%arg0: i32, %arg1: memref<16x128xf32, #tpu.memory_space<vmem>>, %arg2: memref<1x128xf32, #tpu.memory_space<vmem>>, %arg3: memref<1x128xf32, #tpu.memory_space<vmem>>, %arg4: memref<16x128xf32, #tpu.memory_space<vmem>>) attributes {dimension_semantics = [#tpu.dimension_semantics<parallel>], iteration_bounds = array<i64: 2>, scalar_prefetch = 0 : i64, scratch_operands = 0 : i64, tpu.core_type = #tpu.core_type<tc>, window_params = [{transform_indices = @transform_0, window_bounds = array<i64: 16, 128>}, {pipeline_mode = #tpu.pipeline_mode<synchronous>, transform_indices = @transform_1, window_bounds = array<i64: 1, 128>}, {pipeline_mode = #tpu.pipeline_mode<synchronous>, transform_indices = @transform_2, window_bounds = array<i64: 1, 128>}, {transform_indices = @transform_3, window_bounds = array<i64: 16, 128>}]} {
    %c0 = arith.constant 0 : index
    %c0_0 = arith.constant 0 : index
    %0 = vector.load %arg1[%c0, %c0_0] : memref<16x128xf32, #tpu.memory_space<vmem>>, vector<16x128xf32>
    %c0_1 = arith.constant 0 : index
    %c0_2 = arith.constant 0 : index
    %1 = vector.load %arg2[%c0_1, %c0_2] : memref<1x128xf32, #tpu.memory_space<vmem>>, vector<1x128xf32>
    %2 = vector.broadcast %1 : vector<1x128xf32> to vector<16x128xf32>
    %3 = arith.mulf %0, %2 : vector<16x128xf32>
    %c0_3 = arith.constant 0 : index
    %c0_4 = arith.constant 0 : index
    %4 = vector.load %arg3[%c0_3, %c0_4] : memref<1x128xf32, #tpu.memory_space<vmem>>, vector<1x128xf32>
    %5 = vector.broadcast %4 : vector<1x128xf32> to vector<16x128xf32>
    %6 = arith.addf %3, %5 : vector<16x128xf32>
    %cst = arith.constant 0.000000e+00 : f32
    %7 = vector.broadcast %cst : f32 to vector<16x128xf32>
    %8 = arith.maximumf %6, %7 : vector<16x128xf32>
    %c0_5 = arith.constant 0 : index
    %c0_6 = arith.constant 0 : index
    %9 = vector.load %arg4[%c0_5, %c0_6] : memref<16x128xf32, #tpu.memory_space<vmem>>, vector<16x128xf32>
    tpu.vector_store %arg4[%c0_5, %c0_6], %8 {strides = array<i32>} : memref<16x128xf32, #tpu.memory_space<vmem>>, vector<16x128xf32>,
    return
  }
  func.func @transform_0(%arg0: i32) -> (i32, i32) {
    %c0_i32 = arith.constant 0 : i32
    %c0_i32_0 = arith.constant 0 : i32
    return %arg0, %c0_i32 : i32, i32
  }
  func.func @transform_1(%arg0: i32) -> (i32, i32) {
    %c0_i32 = arith.constant 0 : i32
    %c0_i32_0 = arith.constant 0 : i32
    %c0_i32_1 = arith.constant 0 : i32
    return %c0_i32, %c0_i32_0 : i32, i32
  }
  func.func @transform_2(%arg0: i32) -> (i32, i32) {
    %c0_i32 = arith.constant 0 : i32
    %c0_i32_0 = arith.constant 0 : i32
    %c0_i32_1 = arith.constant 0 : i32
    return %c0_i32, %c0_i32_0 : i32, i32
  }
  func.func @transform_3(%arg0: i32) -> (i32, i32) {
    %c0_i32 = arith.constant 0 : i32
    %c0_i32_0 = arith.constant 0 : i32
    return %arg0, %c0_i32 : i32, i32
  }
}

module attributes {stable_mosaic.version = 11 : i64} {
  func.func @conv_stats_kernel(%arg0: i32, %arg1: memref<16x36xf32, #tpu.memory_space<vmem>>, %arg2: memref<36x128xf32, #tpu.memory_space<vmem>>, %arg3: memref<16x128xf32, #tpu.memory_space<vmem>>, %arg4: memref<8x128xf32, #tpu.memory_space<vmem>>) attributes {dimension_semantics = [#tpu.dimension_semantics<parallel>], iteration_bounds = array<i64: 2>, scalar_prefetch = 0 : i64, scratch_operands = 0 : i64, tpu.core_type = #tpu.core_type<tc>, window_params = [{transform_indices = @transform_0, window_bounds = array<i64: 16, 36>}, {pipeline_mode = #tpu.pipeline_mode<synchronous>, transform_indices = @transform_1, window_bounds = array<i64: 36, 128>}, {transform_indices = @transform_2, window_bounds = array<i64: 16, 128>}, {transform_indices = @transform_3, window_bounds = array<i64: 8, 128>}]} {
    %c0 = arith.constant 0 : index
    %c0_0 = arith.constant 0 : index
    %0 = vector.load %arg1[%c0, %c0_0] : memref<16x36xf32, #tpu.memory_space<vmem>>, vector<16x36xf32>
    %c0_1 = arith.constant 0 : index
    %c0_2 = arith.constant 0 : index
    %1 = vector.load %arg2[%c0_1, %c0_2] : memref<36x128xf32, #tpu.memory_space<vmem>>, vector<36x128xf32>
    %cst = arith.constant dense<0.000000e+00> : vector<16x128xf32>
    %2 = tpu.matmul %0, %1, %cst {dimension_numbers = #tpu.dot_dimension_numbers<[1], [0], [0], [1], [0, 0, 1, 1], [], []>} : vector<16x36xf32>, vector<36x128xf32>, vector<16x128xf32> -> vector<16x128xf32>
    %c0_3 = arith.constant 0 : index
    %c0_4 = arith.constant 0 : index
    %3 = vector.load %arg3[%c0_3, %c0_4] : memref<16x128xf32, #tpu.memory_space<vmem>>, vector<16x128xf32>
    tpu.vector_store %arg3[%c0_3, %c0_4], %2 {strides = array<i32>} : memref<16x128xf32, #tpu.memory_space<vmem>>, vector<16x128xf32>,
    %cst_5 = arith.constant dense<0.000000e+00> : vector<128xf32>
    %4 = vector.multi_reduction <add>, %2, %cst_5 [0] : vector<16x128xf32> to vector<128xf32>
    %5 = vector.shape_cast %4 : vector<128xf32> to vector<1x128xf32>
    %6 = arith.mulf %2, %2 : vector<16x128xf32>
    %cst_6 = arith.constant dense<0.000000e+00> : vector<128xf32>
    %7 = vector.multi_reduction <add>, %6, %cst_6 [0] : vector<16x128xf32> to vector<128xf32>
    %8 = vector.shape_cast %7 : vector<128xf32> to vector<1x128xf32>
    %cst_7 = arith.constant 0.000000e+00 : f32
    %9 = vector.broadcast %cst_7 : f32 to vector<6x128xf32>
    %10 = tpu.concatenate %5, %8, %9 in 0 : vector<1x128xf32>, vector<1x128xf32>, vector<6x128xf32> -> vector<8x128xf32>
    %c0_8 = arith.constant 0 : index
    %c0_9 = arith.constant 0 : index
    %11 = vector.load %arg4[%c0_8, %c0_9] : memref<8x128xf32, #tpu.memory_space<vmem>>, vector<8x128xf32>
    tpu.vector_store %arg4[%c0_8, %c0_9], %10 {strides = array<i32>} : memref<8x128xf32, #tpu.memory_space<vmem>>, vector<8x128xf32>,
    return
  }
  func.func @transform_0(%arg0: i32) -> (i32, i32) {
    %c0_i32 = arith.constant 0 : i32
    %c0_i32_0 = arith.constant 0 : i32
    return %arg0, %c0_i32 : i32, i32
  }
  func.func @transform_1(%arg0: i32) -> (i32, i32) {
    %c0_i32 = arith.constant 0 : i32
    %c0_i32_0 = arith.constant 0 : i32
    %c0_i32_1 = arith.constant 0 : i32
    return %c0_i32, %c0_i32_0 : i32, i32
  }
  func.func @transform_2(%arg0: i32) -> (i32, i32) {
    %c0_i32 = arith.constant 0 : i32
    %c0_i32_0 = arith.constant 0 : i32
    return %arg0, %c0_i32 : i32, i32
  }
  func.func @transform_3(%arg0: i32) -> (i32, i32) {
    %c0_i32 = arith.constant 0 : i32
    %c0_i32_0 = arith.constant 0 : i32
    return %arg0, %c0_i32 : i32, i32
  }
}

module attributes {stable_mosaic.version = 11 : i64} {
  func.func @dual_bn_add_kernel(%arg0: i32, %arg1: memref<16x128xf32, #tpu.memory_space<vmem>>, %arg2: memref<16x128xf32, #tpu.memory_space<vmem>>, %arg3: memref<1x128xf32, #tpu.memory_space<vmem>>, %arg4: memref<1x128xf32, #tpu.memory_space<vmem>>, %arg5: memref<1x128xf32, #tpu.memory_space<vmem>>, %arg6: memref<1x128xf32, #tpu.memory_space<vmem>>, %arg7: memref<16x128xf32, #tpu.memory_space<vmem>>) attributes {dimension_semantics = [#tpu.dimension_semantics<parallel>], iteration_bounds = array<i64: 2>, scalar_prefetch = 0 : i64, scratch_operands = 0 : i64, tpu.core_type = #tpu.core_type<tc>, window_params = [{transform_indices = @transform_0, window_bounds = array<i64: 16, 128>}, {transform_indices = @transform_1, window_bounds = array<i64: 16, 128>}, {pipeline_mode = #tpu.pipeline_mode<synchronous>, transform_indices = @transform_2, window_bounds = array<i64: 1, 128>}, {pipeline_mode = #tpu.pipeline_mode<synchronous>, transform_indices = @transform_3, window_bounds = array<i64: 1, 128>}, {pipeline_mode = #tpu.pipeline_mode<synchronous>, transform_indices = @transform_4, window_bounds = array<i64: 1, 128>}, {pipeline_mode = #tpu.pipeline_mode<synchronous>, transform_indices = @transform_5, window_bounds = array<i64: 1, 128>}, {transform_indices = @transform_6, window_bounds = array<i64: 16, 128>}]} {
    %c0 = arith.constant 0 : index
    %c0_0 = arith.constant 0 : index
    %0 = vector.load %arg1[%c0, %c0_0] : memref<16x128xf32, #tpu.memory_space<vmem>>, vector<16x128xf32>
    %c0_1 = arith.constant 0 : index
    %c0_2 = arith.constant 0 : index
    %1 = vector.load %arg3[%c0_1, %c0_2] : memref<1x128xf32, #tpu.memory_space<vmem>>, vector<1x128xf32>
    %2 = vector.broadcast %1 : vector<1x128xf32> to vector<16x128xf32>
    %3 = arith.mulf %0, %2 : vector<16x128xf32>
    %c0_3 = arith.constant 0 : index
    %c0_4 = arith.constant 0 : index
    %4 = vector.load %arg4[%c0_3, %c0_4] : memref<1x128xf32, #tpu.memory_space<vmem>>, vector<1x128xf32>
    %5 = vector.broadcast %4 : vector<1x128xf32> to vector<16x128xf32>
    %6 = arith.addf %3, %5 : vector<16x128xf32>
    %c0_5 = arith.constant 0 : index
    %c0_6 = arith.constant 0 : index
    %7 = vector.load %arg2[%c0_5, %c0_6] : memref<16x128xf32, #tpu.memory_space<vmem>>, vector<16x128xf32>
    %c0_7 = arith.constant 0 : index
    %c0_8 = arith.constant 0 : index
    %8 = vector.load %arg5[%c0_7, %c0_8] : memref<1x128xf32, #tpu.memory_space<vmem>>, vector<1x128xf32>
    %9 = vector.broadcast %8 : vector<1x128xf32> to vector<16x128xf32>
    %10 = arith.mulf %7, %9 : vector<16x128xf32>
    %11 = arith.addf %6, %10 : vector<16x128xf32>
    %c0_9 = arith.constant 0 : index
    %c0_10 = arith.constant 0 : index
    %12 = vector.load %arg6[%c0_9, %c0_10] : memref<1x128xf32, #tpu.memory_space<vmem>>, vector<1x128xf32>
    %13 = vector.broadcast %12 : vector<1x128xf32> to vector<16x128xf32>
    %14 = arith.addf %11, %13 : vector<16x128xf32>
    %c0_11 = arith.constant 0 : index
    %c0_12 = arith.constant 0 : index
    %15 = vector.load %arg7[%c0_11, %c0_12] : memref<16x128xf32, #tpu.memory_space<vmem>>, vector<16x128xf32>
    tpu.vector_store %arg7[%c0_11, %c0_12], %14 {strides = array<i32>} : memref<16x128xf32, #tpu.memory_space<vmem>>, vector<16x128xf32>,
    return
  }
  func.func @transform_0(%arg0: i32) -> (i32, i32) {
    %c0_i32 = arith.constant 0 : i32
    %c0_i32_0 = arith.constant 0 : i32
    return %arg0, %c0_i32 : i32, i32
  }
  func.func @transform_1(%arg0: i32) -> (i32, i32) {
    %c0_i32 = arith.constant 0 : i32
    %c0_i32_0 = arith.constant 0 : i32
    return %arg0, %c0_i32 : i32, i32
  }
  func.func @transform_2(%arg0: i32) -> (i32, i32) {
    %c0_i32 = arith.constant 0 : i32
    %c0_i32_0 = arith.constant 0 : i32
    %c0_i32_1 = arith.constant 0 : i32
    return %c0_i32, %c0_i32_0 : i32, i32
  }
  func.func @transform_3(%arg0: i32) -> (i32, i32) {
    %c0_i32 = arith.constant 0 : i32
    %c0_i32_0 = arith.constant 0 : i32
    %c0_i32_1 = arith.constant 0 : i32
    return %c0_i32, %c0_i32_0 : i32, i32
  }
  func.func @transform_4(%arg0: i32) -> (i32, i32) {
    %c0_i32 = arith.constant 0 : i32
    %c0_i32_0 = arith.constant 0 : i32
    %c0_i32_1 = arith.constant 0 : i32
    return %c0_i32, %c0_i32_0 : i32, i32
  }
  func.func @transform_5(%arg0: i32) -> (i32, i32) {
    %c0_i32 = arith.constant 0 : i32
    %c0_i32_0 = arith.constant 0 : i32
    %c0_i32_1 = arith.constant 0 : i32
    return %c0_i32, %c0_i32_0 : i32, i32
  }
  func.func @transform_6(%arg0: i32) -> (i32, i32) {
    %c0_i32 = arith.constant 0 : i32
    %c0_i32_0 = arith.constant 0 : i32
    return %arg0, %c0_i32 : i32, i32
  }
}

module attributes {stable_mosaic.version = 11 : i64} {
  func.func @dual_conv_stats_kernel(%arg0: i32, %arg1: memref<16x1152xf32, #tpu.memory_space<vmem>>, %arg2: memref<1152x128xf32, #tpu.memory_space<vmem>>, %arg3: memref<16x4xf32, #tpu.memory_space<vmem>>, %arg4: memref<4x128xf32, #tpu.memory_space<vmem>>, %arg5: memref<16x128xf32, #tpu.memory_space<vmem>>, %arg6: memref<16x128xf32, #tpu.memory_space<vmem>>, %arg7: memref<8x128xf32, #tpu.memory_space<vmem>>, %arg8: memref<8x128xf32, #tpu.memory_space<vmem>>) attributes {dimension_semantics = [#tpu.dimension_semantics<parallel>], iteration_bounds = array<i64: 2>, scalar_prefetch = 0 : i64, scratch_operands = 0 : i64, tpu.core_type = #tpu.core_type<tc>, window_params = [{transform_indices = @transform_0, window_bounds = array<i64: 16, 1152>}, {pipeline_mode = #tpu.pipeline_mode<synchronous>, transform_indices = @transform_1, window_bounds = array<i64: 1152, 128>}, {transform_indices = @transform_2, window_bounds = array<i64: 16, 4>}, {pipeline_mode = #tpu.pipeline_mode<synchronous>, transform_indices = @transform_3, window_bounds = array<i64: 4, 128>}, {transform_indices = @transform_4, window_bounds = array<i64: 16, 128>}, {transform_indices = @transform_5, window_bounds = array<i64: 16, 128>}, {transform_indices = @transform_6, window_bounds = array<i64: 8, 128>}, {transform_indices = @transform_7, window_bounds = array<i64: 8, 128>}]} {
    %c0 = arith.constant 0 : index
    %c0_0 = arith.constant 0 : index
    %0 = vector.load %arg1[%c0, %c0_0] : memref<16x1152xf32, #tpu.memory_space<vmem>>, vector<16x1152xf32>
    %c0_1 = arith.constant 0 : index
    %c0_2 = arith.constant 0 : index
    %1 = vector.load %arg2[%c0_1, %c0_2] : memref<1152x128xf32, #tpu.memory_space<vmem>>, vector<1152x128xf32>
    %cst = arith.constant dense<0.000000e+00> : vector<16x128xf32>
    %2 = tpu.matmul %0, %1, %cst {dimension_numbers = #tpu.dot_dimension_numbers<[1], [0], [0], [1], [0, 0, 1, 1], [], []>} : vector<16x1152xf32>, vector<1152x128xf32>, vector<16x128xf32> -> vector<16x128xf32>
    %c0_3 = arith.constant 0 : index
    %c0_4 = arith.constant 0 : index
    %3 = vector.load %arg5[%c0_3, %c0_4] : memref<16x128xf32, #tpu.memory_space<vmem>>, vector<16x128xf32>
    tpu.vector_store %arg5[%c0_3, %c0_4], %2 {strides = array<i32>} : memref<16x128xf32, #tpu.memory_space<vmem>>, vector<16x128xf32>,
    %cst_5 = arith.constant dense<0.000000e+00> : vector<128xf32>
    %4 = vector.multi_reduction <add>, %2, %cst_5 [0] : vector<16x128xf32> to vector<128xf32>
    %5 = vector.shape_cast %4 : vector<128xf32> to vector<1x128xf32>
    %6 = arith.mulf %2, %2 : vector<16x128xf32>
    %cst_6 = arith.constant dense<0.000000e+00> : vector<128xf32>
    %7 = vector.multi_reduction <add>, %6, %cst_6 [0] : vector<16x128xf32> to vector<128xf32>
    %8 = vector.shape_cast %7 : vector<128xf32> to vector<1x128xf32>
    %cst_7 = arith.constant 0.000000e+00 : f32
    %9 = vector.broadcast %cst_7 : f32 to vector<6x128xf32>
    %10 = tpu.concatenate %5, %8, %9 in 0 : vector<1x128xf32>, vector<1x128xf32>, vector<6x128xf32> -> vector<8x128xf32>
    %c0_8 = arith.constant 0 : index
    %c0_9 = arith.constant 0 : index
    %11 = vector.load %arg7[%c0_8, %c0_9] : memref<8x128xf32, #tpu.memory_space<vmem>>, vector<8x128xf32>
    tpu.vector_store %arg7[%c0_8, %c0_9], %10 {strides = array<i32>} : memref<8x128xf32, #tpu.memory_space<vmem>>, vector<8x128xf32>,
    %c0_10 = arith.constant 0 : index
    %c0_11 = arith.constant 0 : index
    %12 = vector.load %arg3[%c0_10, %c0_11] : memref<16x4xf32, #tpu.memory_space<vmem>>, vector<16x4xf32>
    %c0_12 = arith.constant 0 : index
    %c0_13 = arith.constant 0 : index
    %13 = vector.load %arg4[%c0_12, %c0_13] : memref<4x128xf32, #tpu.memory_space<vmem>>, vector<4x128xf32>
    %cst_14 = arith.constant dense<0.000000e+00> : vector<16x128xf32>
    %14 = tpu.matmul %12, %13, %cst_14 {dimension_numbers = #tpu.dot_dimension_numbers<[1], [0], [0], [1], [0, 0, 1, 1], [], []>} : vector<16x4xf32>, vector<4x128xf32>, vector<16x128xf32> -> vector<16x128xf32>
    %c0_15 = arith.constant 0 : index
    %c0_16 = arith.constant 0 : index
    %15 = vector.load %arg6[%c0_15, %c0_16] : memref<16x128xf32, #tpu.memory_space<vmem>>, vector<16x128xf32>
    tpu.vector_store %arg6[%c0_15, %c0_16], %14 {strides = array<i32>} : memref<16x128xf32, #tpu.memory_space<vmem>>, vector<16x128xf32>,
    %cst_17 = arith.constant dense<0.000000e+00> : vector<128xf32>
    %16 = vector.multi_reduction <add>, %14, %cst_17 [0] : vector<16x128xf32> to vector<128xf32>
    %17 = vector.shape_cast %16 : vector<128xf32> to vector<1x128xf32>
    %18 = arith.mulf %14, %14 : vector<16x128xf32>
    %cst_18 = arith.constant dense<0.000000e+00> : vector<128xf32>
    %19 = vector.multi_reduction <add>, %18, %cst_18 [0] : vector<16x128xf32> to vector<128xf32>
    %20 = vector.shape_cast %19 : vector<128xf32> to vector<1x128xf32>
    %cst_19 = arith.constant 0.000000e+00 : f32
    %21 = vector.broadcast %cst_19 : f32 to vector<6x128xf32>
    %22 = tpu.concatenate %17, %20, %21 in 0 : vector<1x128xf32>, vector<1x128xf32>, vector<6x128xf32> -> vector<8x128xf32>
    %c0_20 = arith.constant 0 : index
    %c0_21 = arith.constant 0 : index
    %23 = vector.load %arg8[%c0_20, %c0_21] : memref<8x128xf32, #tpu.memory_space<vmem>>, vector<8x128xf32>
    tpu.vector_store %arg8[%c0_20, %c0_21], %22 {strides = array<i32>} : memref<8x128xf32, #tpu.memory_space<vmem>>, vector<8x128xf32>,
    return
  }
  func.func @transform_0(%arg0: i32) -> (i32, i32) {
    %c0_i32 = arith.constant 0 : i32
    %c0_i32_0 = arith.constant 0 : i32
    return %arg0, %c0_i32 : i32, i32
  }
  func.func @transform_1(%arg0: i32) -> (i32, i32) {
    %c0_i32 = arith.constant 0 : i32
    %c0_i32_0 = arith.constant 0 : i32
    %c0_i32_1 = arith.constant 0 : i32
    return %c0_i32, %c0_i32_0 : i32, i32
  }
  func.func @transform_2(%arg0: i32) -> (i32, i32) {
    %c0_i32 = arith.constant 0 : i32
    %c0_i32_0 = arith.constant 0 : i32
    return %arg0, %c0_i32 : i32, i32
  }
  func.func @transform_3(%arg0: i32) -> (i32, i32) {
    %c0_i32 = arith.constant 0 : i32
    %c0_i32_0 = arith.constant 0 : i32
    %c0_i32_1 = arith.constant 0 : i32
    return %c0_i32, %c0_i32_0 : i32, i32
  }
  func.func @transform_4(%arg0: i32) -> (i32, i32) {
    %c0_i32 = arith.constant 0 : i32
    %c0_i32_0 = arith.constant 0 : i32
    return %arg0, %c0_i32 : i32, i32
  }
  func.func @transform_5(%arg0: i32) -> (i32, i32) {
    %c0_i32 = arith.constant 0 : i32
    %c0_i32_0 = arith.constant 0 : i32
    return %arg0, %c0_i32 : i32, i32
  }
  func.func @transform_6(%arg0: i32) -> (i32, i32) {
    %c0_i32 = arith.constant 0 : i32
    %c0_i32_0 = arith.constant 0 : i32
    return %arg0, %c0_i32 : i32, i32
  }
  func.func @transform_7(%arg0: i32) -> (i32, i32) {
    %c0_i32 = arith.constant 0 : i32
    %c0_i32_0 = arith.constant 0 : i32
    return %arg0, %c0_i32 : i32, i32
  }
}

</mosaic_0001>

<llo_original>
// kernel: resnet_block_forward.4
$region0: #{resnet_block_forward.4}
  #allocation0 [shape = 'u32[]', space=smem, size = 0x4, offset = 0x4, fixed_abs, tag = 'smem constant byte address 0x4 - core index']
  #allocation1 [shape = 'u32[72,128]{1,0:T(1,128)}', space=vmem, size = 0x9000, scoped, tag = 'internal scratch']
  %s0 = inlined_call_operand.vmem [shape: f32[32,36], index: 0, kind: input, shape index: {}]
  %s1 = inlined_call_operand.vmem [shape: f32[36,128], index: 1, kind: input, shape index: {}]
  %s2 = inlined_call_operand.vmem [shape: f32[32,128], index: 2, kind: output, shape index: {0}]
  %s3 = inlined_call_operand.vmem [shape: f32[16,128], index: 3, kind: output, shape index: {1}]
  %4 = xla_tuple %s2, %s3
  %s5 = sld [smem:[#allocation0]]
  $region49: #{resnet_block_forward.4} parent=0
    _
  %s7 = ssub.s32 1, %s5
  %s8 = scalar_select 0, %s7, %s5
  loop: start=0, step=1, limit=4
  $region2: #{resnet_block_forward.4} parent=0 // loop_pre_header
    _
  $region3: #{resnet_block_forward.4} parent=0 // loop_header
    %s10 = sphi 0, %s14
    %p11 = scmp.ge.s32.totalorder %s10, 4
    %s20 = sphi 0, %s22
    %s23 = sphi 0, %s20
    %s24 = sphi 0, %s23
    %s40 = sphi 0, %s24
    %s44 = sphi 0, %s44
    %s46 = sphi 0, %s44
    %s47 = sphi 0, %s46
    %s61 = sphi 0, %s47
    %s67 = sphi 0, %s69
    %s70 = sphi 0, %s67
    %s71 = sphi 0, %s70
    %s87 = sphi 0, %s71
    %s93 = sphi 0, %s95
    %s96 = sphi 0, %s93
    %s97 = sphi 0, %s96
    %s113 = sphi 0, %s97
  $region4: #{resnet_block_forward.4} parent=0 // loop_header_branch
    %13 = sbr.rel (%p11) target = $region8
  $region5: #{resnet_block_forward.4} parent=0 // loop_body
    %s15 = ssub.s32 %s10, 1
    %s16 = ssub.s32 %s10, 2
    %s17 = sadd.s32 %s10, 1
    %s18 = ssub.s32 %s10, %s17
    %p19 = scmp.eq.s32.totalorder %s18, 0
    %s21 = sadd.s32 %s20, 1
    %s22 = scalar_select %p19, %s20, %s21
    %p25 = pneg %p19
    %p26 = scmp.eq.s32.totalorder %s10, 1
    %p27 = por %p25, %p26
    %p28 = scmp.ne.s32.totalorder %s20, %s23
    %p29 = scmp.eq.s32.totalorder %s10, 0
    %p30 = por %p28, %p29
    %p31 = scmp.ne.s32.totalorder %s20, %s23
    %p32 = scmp.eq.s32.totalorder %s15, 1
    %p33 = por %p31, %p32
    %p34 = scmp.ne.s32.totalorder %s23, %s24
    %p35 = scmp.eq.s32.totalorder %s15, 0
    %p36 = por %p34, %p35
    %p37 = scmp.ne.s32.totalorder %s23, %s24
    %p38 = scmp.eq.s32.totalorder %s16, 1
    %p39 = por %p37, %p38
    %p41 = scmp.ne.s32.totalorder %s24, %s40
    %p42 = scmp.eq.s32.totalorder %s16, 0
    %p43 = por %p41, %p42
    %s45 = sadd.s32 %s44, 1
    %p48 = scmp.eq.s32.totalorder %s10, 1
    %p49 = scmp.ne.s32.totalorder %s44, %s46
    %p50 = scmp.eq.s32.totalorder %s10, 0
    %p51 = por %p49, %p50
    %p52 = scmp.ne.s32.totalorder %s44, %s46
    %p53 = scmp.eq.s32.totalorder %s15, 1
    %p54 = por %p52, %p53
    %p55 = scmp.ne.s32.totalorder %s46, %s47
    %p56 = scmp.eq.s32.totalorder %s15, 0
    %p57 = por %p55, %p56
    %p58 = scmp.ne.s32.totalorder %s46, %s47
    %p59 = scmp.eq.s32.totalorder %s16, 1
    %p60 = por %p58, %p59
    %p62 = scmp.ne.s32.totalorder %s47, %s61
    %p63 = scmp.eq.s32.totalorder %s16, 0
    %p64 = por %p62, %p63
    %s65 = ssub.s32 %s10, %s17
    %p66 = scmp.eq.s32.totalorder %s65, 0
    %s68 = sadd.s32 %s67, 1
    %s69 = scalar_select %p66, %s67, %s68
    %p72 = pneg %p66
    %p73 = scmp.eq.s32.totalorder %s10, 1
    %p74 = por %p72, %p73
    %p75 = scmp.ne.s32.totalorder %s67, %s70
    %p76 = scmp.eq.s32.totalorder %s10, 0
    %p77 = por %p75, %p76
    %p78 = scmp.ne.s32.totalorder %s67, %s70
    %p79 = scmp.eq.s32.totalorder %s15, 1
    %p80 = por %p78, %p79
    %p81 = scmp.ne.s32.totalorder %s70, %s71
    %p82 = scmp.eq.s32.totalorder %s15, 0
    %p83 = por %p81, %p82
    %p84 = scmp.ne.s32.totalorder %s70, %s71
    %p85 = scmp.eq.s32.totalorder %s16, 1
    %p86 = por %p84, %p85
    %p88 = scmp.ne.s32.totalorder %s71, %s87
    %p89 = scmp.eq.s32.totalorder %s16, 0
    %p90 = por %p88, %p89
    %s91 = ssub.s32 %s10, %s17
    %p92 = scmp.eq.s32.totalorder %s91, 0
    %s94 = sadd.s32 %s93, 1
    %s95 = scalar_select %p92, %s93, %s94
    %p98 = pneg %p92
    %p99 = scmp.eq.s32.totalorder %s10, 1
    %p100 = por %p98, %p99
    %p101 = scmp.ne.s32.totalorder %s93, %s96
    %p102 = scmp.eq.s32.totalorder %s10, 0
    %p103 = por %p101, %p102
    %p104 = scmp.ne.s32.totalorder %s93, %s96
    %p105 = scmp.eq.s32.totalorder %s15, 1
    %p106 = por %p104, %p105
    %p107 = scmp.ne.s32.totalorder %s96, %s97
    %p108 = scmp.eq.s32.totalorder %s15, 0
    %p109 = por %p107, %p108
    %p110 = scmp.ne.s32.totalorder %s96, %s97
    %p111 = scmp.eq.s32.totalorder %s16, 1
    %p112 = por %p110, %p111
    %p114 = scmp.ne.s32.totalorder %s97, %s113
    %p115 = scmp.eq.s32.totalorder %s16, 0
    %p116 = por %p114, %p115
    %p117 = scmp.le.s32.totalorder 1, %s10
    %p118 = scmp.lt.s32.totalorder %s10, 3
    %p119 = pnand %p117, %p118
    %p120 = pneg %p119
    // Predicated region
    $region9: #{resnet_block_forward.4} parent=5 // pred_check
      _
    $region10: #{resnet_block_forward.4} parent=5 // pred_check_branch
      %122 = sbr.rel (%p119) target = $region12
    $region11: #{resnet_block_forward.4} parent=5 // pred_region
      %s123 = ssub.s32 %s10, 1
      // Predicated region
      $region13: #{resnet_block_forward.4} parent=11 // pred_check
        %p124 = pneg %p57
      $region14: #{resnet_block_forward.4} parent=11 // pred_check_branch
        %126 = sbr.rel (%p124) target = $region16
      $region15: #{resnet_block_forward.4} parent=11 // pred_region
        _
      $region16: #{resnet_block_forward.4} parent=11 // pred_fallthru
        _
    $region12: #{resnet_block_forward.4} parent=5 // pred_fallthru
      _
    %p127 = scmp.lt.s32.totalorder %s10, 2
    // Predicated region
    $region17: #{resnet_block_forward.4} parent=5 // pred_check
      %p128 = pneg %p127
    $region18: #{resnet_block_forward.4} parent=5 // pred_check_branch
      %130 = sbr.rel (%p128) target = $region20
    $region19: #{resnet_block_forward.4} parent=5 // pred_region
      // Predicated region
      $region21: #{resnet_block_forward.4} parent=19 // pred_check
        %p131 = pneg %p30
      $region22: #{resnet_block_forward.4} parent=19 // pred_check_branch
        %133 = sbr.rel (%p131) target = $region24
      $region23: #{resnet_block_forward.4} parent=19 // pred_region
        %s134 = smul.u32 2, %s10
        %p135 = scmp.lt.s32.totalorder %s134, 3
        %s136 = scalar_select %p135, %s134, 3
        %s137 = smul.addr %s136, 8
        %s138 = scalar_lea.vmem %s0, %s137
        %s139 = smul.u32 2, %s10
      $region24: #{resnet_block_forward.4} parent=19 // pred_fallthru
        _
    $region20: #{resnet_block_forward.4} parent=5 // pred_fallthru
      _
    %p140 = scmp.le.s32.totalorder 1, %s10
    %p141 = scmp.lt.s32.totalorder %s10, 3
    %p142 = pnand %p140, %p141
    %p143 = pneg %p142
    // Predicated region
    $region25: #{resnet_block_forward.4} parent=5 // pred_check
      _
    $region26: #{resnet_block_forward.4} parent=5 // pred_check_branch
      %145 = sbr.rel (%p142) target = $region28
    $region27: #{resnet_block_forward.4} parent=5 // pred_region
      %s146 = ssub.s32 %s10, 1
      %s147 = smul.u32 2, %s15
      %p148 = scmp.lt.s32.totalorder %s147, 3
      %s149 = scalar_select %p148, %s147, 3
      %s150 = smul.addr %s149, 8
      %s151 = scalar_lea.vmem %s0, %s150
      %p152 = pneg %p36
      %p153 = pneg %p33
      %p154 = pneg %p57
      %p155 = pneg %p54
      %p156 = pneg %p83
      %p157 = pneg %p80
      %s158 = smul.u32 2, %s15
      %p159 = scmp.lt.s32.totalorder %s158, 3
      %s160 = scalar_select %p159, %s158, 3
      %s161 = smul.addr %s160, 8
      %s162 = scalar_lea.vmem %s2, %s161
      %p163 = pneg %p109
      %p164 = pneg %p106
      %p165 = scmp.lt.s32.totalorder %s15, 1
      %s166 = scalar_select %p165, %s15, 1
      %s167 = smul.addr %s166, 8
      %s168 = scalar_lea.vmem %s3, %s167
      %s169 = smul.u32 2, %s15
      %p170 = scmp.lt.s32.totalorder %s169, 3
      %s171 = scalar_select %p170, %s169, 3
      %s172 = smul.addr %s171, 8
      %s173 = scalar_lea.vmem %s0, %s172
      %s174 = smul.u32 2, %s15
      %s175 = smul.u32 2, %s15
      %p176 = scmp.lt.s32.totalorder %s175, 3
      %s177 = scalar_select %p176, %s175, 3
      %s178 = smul.addr %s177, 8
      %s179 = scalar_lea.vmem %s2, %s178
      %s180 = smul.u32 2, %s15
      %p181 = scmp.lt.s32.totalorder %s15, 1
      %s182 = scalar_select %p181, %s15, 1
      %s183 = smul.addr %s182, 8
      %s184 = scalar_lea.vmem %s3, %s183
      %v185 = vld [vmem:[%s173] sm:$0xff]
      %v186 = vld [vmem:[%s173 + $0x8] sm:$0xff]
      %v187 = vld [vmem:[%s1] sm:$0xff]
      %v188 = vld [vmem:[%s1 + $0x8] sm:$0xff]
      %v189 = vld [vmem:[%s1 + $0x10] sm:$0xff]
      %v190 = vld [vmem:[%s1 + $0x18] sm:$0xff]
      %v191 = vld [vmem:[%s1 + $0x20] sm:$0xf]
      %vm192 = vcmask 293888
      %v194 = vsel %vm192, %v185, 0
      %v197 = vsel %vm192, %v186, 0
      %vm199 = vcmask 1043456
      %v201 = vsel %vm199, %v191, 0
      %203 = vmatpush.msra.mxu0 0.0
      %204 = vmatpush.msra.mxu0 0.0
      %205 = vmatpush.msra.mxu0 0.0
      %206 = vmatpush.msra.mxu0 0.0
      %207 = vmatpush.msra.mxu0 0.0
      %208 = vmatpush.msra.mxu0 0.0
      %209 = vmatpush.msra.mxu0 0.0
      %210 = vmatpush.msra.mxu0 0.0
      %211 = vmatpush.msra.mxu0 0.0
      %212 = vmatpush.msra.mxu0 0.0
      %213 = vmatpush.msra.mxu0 0.0
      %214 = vmatpush.msra.mxu0 %v201
      %215 = vmatpush.msra.mxu0 %v190
      %216 = vmatpush.msra.mxu0 %v189
      %217 = vmatpush.msra.mxu0 %v188
      %218 = vmatpush.msra.mxu0 %v187
      %219 = vmatmul.f32.gmra.mxu0 %v194
      %v220 = vpop.f32.mrf.mxu0
      %v221 = vadd.f32 0.0, %v220
      %222 = vmatmul.f32.gmra.mxu0 %v197
      %v223 = vpop.f32.mrf.mxu0
      %v224 = vadd.f32 0.0, %v223
      %225 = vdwg.mxu0
      %226 = vst [vmem:[%s179] sm:$0xff] %v221
      %227 = vst [vmem:[%s179 + $0x8] sm:$0xff] %v224
      %v228 = vadd.f32 %v221, %v224
      %v229 = vrot.slane %v228, 4
      %v230 = vadd.f32 %v228, %v229
      %v231 = vrot.slane %v230, 2
      %v232 = vadd.f32 %v230, %v231
      %v233 = vrot.slane %v232, 1
      %v234 = vadd.f32 %v232, %v233
      %v235 = vmul.f32 %v221, %v221
      %v236 = vmul.f32 %v224, %v224
      %v237 = vadd.f32 %v235, %v236
      %v238 = vrot.slane %v237, 4
      %v239 = vadd.f32 %v237, %v238
      %v240 = vrot.slane %v239, 2
      %v241 = vadd.f32 %v239, %v240
      %v242 = vrot.slane %v241, 1
      %v243 = vadd.f32 %v241, %v242
      %vm244 = vcmask 1040384
      %v245 = vsel %vm244, %v234, %v243
      %vm246 = vcmask 1041408
      %v247 = vsel %vm246, %v245, 0.0
      %248 = vst [vmem:[%s184] sm:$0xff] %v247
      %s249 = smul.u32 2, %s15
      %p250 = scmp.lt.s32.totalorder %s249, 3
      %s251 = scalar_select %p250, %s249, 3
      %s252 = smul.addr %s251, 8
      %s253 = scalar_lea.vmem %s2, %s252
      %p254 = scmp.lt.s32.totalorder %s15, 1
      %s255 = scalar_select %p254, %s15, 1
      %s256 = smul.addr %s255, 8
      %s257 = scalar_lea.vmem %s3, %s256
      // Predicated region
      $region29: #{resnet_block_forward.4} parent=27 // pred_check
        %p258 = pneg %p80
      $region30: #{resnet_block_forward.4} parent=27 // pred_check_branch
        %260 = sbr.rel (%p258) target = $region32
      $region31: #{resnet_block_forward.4} parent=27 // pred_region
        %s261 = smul.u32 2, %s15
      $region32: #{resnet_block_forward.4} parent=27 // pred_fallthru
        _
      // Predicated region
      $region33: #{resnet_block_forward.4} parent=27 // pred_check
        %p262 = pneg %p106
      $region34: #{resnet_block_forward.4} parent=27 // pred_check_branch
        %264 = sbr.rel (%p262) target = $region36
      $region35: #{resnet_block_forward.4} parent=27 // pred_region
        _
      $region36: #{resnet_block_forward.4} parent=27 // pred_fallthru
        _
    $region28: #{resnet_block_forward.4} parent=5 // pred_fallthru
      _
    %p265 = scmp.le.s32.totalorder 2, %s10
    // Predicated region
    $region37: #{resnet_block_forward.4} parent=5 // pred_check
      %p266 = pneg %p265
    $region38: #{resnet_block_forward.4} parent=5 // pred_check_branch
      %268 = sbr.rel (%p266) target = $region40
    $region39: #{resnet_block_forward.4} parent=5 // pred_region
      %s269 = ssub.s32 %s10, 2
      // Predicated region
      $region41: #{resnet_block_forward.4} parent=39 // pred_check
        %p270 = pneg %p86
      $region42: #{resnet_block_forward.4} parent=39 // pred_check_branch
        %272 = sbr.rel (%p270) target = $region44
      $region43: #{resnet_block_forward.4} parent=39 // pred_region
        %s273 = smul.u32 2, %s16
        %p274 = scmp.lt.s32.totalorder %s273, 3
        %s275 = scalar_select %p274, %s273, 3
        %s276 = smul.addr %s275, 8
        %s277 = scalar_lea.vmem %s2, %s276
      $region44: #{resnet_block_forward.4} parent=39 // pred_fallthru
        _
      // Predicated region
      $region45: #{resnet_block_forward.4} parent=39 // pred_check
        %p278 = pneg %p112
      $region46: #{resnet_block_forward.4} parent=39 // pred_check_branch
        %280 = sbr.rel (%p278) target = $region48
      $region47: #{resnet_block_forward.4} parent=39 // pred_region
        %p281 = scmp.lt.s32.totalorder %s16, 1
        %s282 = scalar_select %p281, %s16, 1
        %s283 = smul.addr %s282, 8
        %s284 = scalar_lea.vmem %s3, %s283
      $region48: #{resnet_block_forward.4} parent=39 // pred_fallthru
        _
    $region40: #{resnet_block_forward.4} parent=5 // pred_fallthru
      _
  $region6: #{resnet_block_forward.4} parent=0 // loop_footer
    %s14 = sadd.s32 1, %s10
  $region7: #{resnet_block_forward.4} parent=0 // loop_footer_branch
    %9 = sbr.rel target = $region3
  $region8: #{resnet_block_forward.4} parent=0 // loop_exit
    _

// kernel: resnet_block_forward.5
$region0: #{resnet_block_forward.5}
  #allocation0 [shape = 'u32[]', space=smem, size = 0x4, offset = 0x4, fixed_abs, tag = 'smem constant byte address 0x4 - core index']
  #allocation1 [shape = 'u32[72,128]{1,0:T(1,128)}', space=vmem, size = 0x9000, scoped, tag = 'internal scratch']
  %s0 = inlined_call_operand.vmem [shape: f32[32,128], index: 0, kind: input, shape index: {}]
  %s1 = inlined_call_operand.vmem [shape: f32[1,128], index: 1, kind: input, shape index: {}]
  %s2 = inlined_call_operand.vmem [shape: f32[1,128], index: 2, kind: input, shape index: {}]
  %s3 = inlined_call_operand.vmem [shape: f32[32,128], index: 3, kind: output, shape index: {}]
  %s4 = sld [smem:[#allocation0]]
  $region45: #{resnet_block_forward.5} parent=0
    _
  %s6 = ssub.s32 1, %s4
  %s7 = scalar_select 0, %s6, %s4
  loop: start=0, step=1, limit=4
  $region2: #{resnet_block_forward.5} parent=0 // loop_pre_header
    _
  $region3: #{resnet_block_forward.5} parent=0 // loop_header
    %s9 = sphi 0, %s13
    %p10 = scmp.ge.s32.totalorder %s9, 4
    %s19 = sphi 0, %s21
    %s22 = sphi 0, %s19
    %s23 = sphi 0, %s22
    %s39 = sphi 0, %s23
    %s43 = sphi 0, %s43
    %s45 = sphi 0, %s43
    %s46 = sphi 0, %s45
    %s60 = sphi 0, %s46
    %s64 = sphi 0, %s64
    %s66 = sphi 0, %s64
    %s67 = sphi 0, %s66
    %s81 = sphi 0, %s67
    %s87 = sphi 0, %s89
    %s90 = sphi 0, %s87
    %s91 = sphi 0, %s90
    %s107 = sphi 0, %s91
  $region4: #{resnet_block_forward.5} parent=0 // loop_header_branch
    %12 = sbr.rel (%p10) target = $region8
  $region5: #{resnet_block_forward.5} parent=0 // loop_body
    %s14 = ssub.s32 %s9, 1
    %s15 = ssub.s32 %s9, 2
    %s16 = sadd.s32 %s9, 1
    %s17 = ssub.s32 %s9, %s16
    %p18 = scmp.eq.s32.totalorder %s17, 0
    %s20 = sadd.s32 %s19, 1
    %s21 = scalar_select %p18, %s19, %s20
    %p24 = pneg %p18
    %p25 = scmp.eq.s32.totalorder %s9, 1
    %p26 = por %p24, %p25
    %p27 = scmp.ne.s32.totalorder %s19, %s22
    %p28 = scmp.eq.s32.totalorder %s9, 0
    %p29 = por %p27, %p28
    %p30 = scmp.ne.s32.totalorder %s19, %s22
    %p31 = scmp.eq.s32.totalorder %s14, 1
    %p32 = por %p30, %p31
    %p33 = scmp.ne.s32.totalorder %s22, %s23
    %p34 = scmp.eq.s32.totalorder %s14, 0
    %p35 = por %p33, %p34
    %p36 = scmp.ne.s32.totalorder %s22, %s23
    %p37 = scmp.eq.s32.totalorder %s15, 1
    %p38 = por %p36, %p37
    %p40 = scmp.ne.s32.totalorder %s23, %s39
    %p41 = scmp.eq.s32.totalorder %s15, 0
    %p42 = por %p40, %p41
    %s44 = sadd.s32 %s43, 1
    %p47 = scmp.eq.s32.totalorder %s9, 1
    %p48 = scmp.ne.s32.totalorder %s43, %s45
    %p49 = scmp.eq.s32.totalorder %s9, 0
    %p50 = por %p48, %p49
    %p51 = scmp.ne.s32.totalorder %s43, %s45
    %p52 = scmp.eq.s32.totalorder %s14, 1
    %p53 = por %p51, %p52
    %p54 = scmp.ne.s32.totalorder %s45, %s46
    %p55 = scmp.eq.s32.totalorder %s14, 0
    %p56 = por %p54, %p55
    %p57 = scmp.ne.s32.totalorder %s45, %s46
    %p58 = scmp.eq.s32.totalorder %s15, 1
    %p59 = por %p57, %p58
    %p61 = scmp.ne.s32.totalorder %s46, %s60
    %p62 = scmp.eq.s32.totalorder %s15, 0
    %p63 = por %p61, %p62
    %s65 = sadd.s32 %s64, 1
    %p68 = scmp.eq.s32.totalorder %s9, 1
    %p69 = scmp.ne.s32.totalorder %s64, %s66
    %p70 = scmp.eq.s32.totalorder %s9, 0
    %p71 = por %p69, %p70
    %p72 = scmp.ne.s32.totalorder %s64, %s66
    %p73 = scmp.eq.s32.totalorder %s14, 1
    %p74 = por %p72, %p73
    %p75 = scmp.ne.s32.totalorder %s66, %s67
    %p76 = scmp.eq.s32.totalorder %s14, 0
    %p77 = por %p75, %p76
    %p78 = scmp.ne.s32.totalorder %s66, %s67
    %p79 = scmp.eq.s32.totalorder %s15, 1
    %p80 = por %p78, %p79
    %p82 = scmp.ne.s32.totalorder %s67, %s81
    %p83 = scmp.eq.s32.totalorder %s15, 0
    %p84 = por %p82, %p83
    %s85 = ssub.s32 %s9, %s16
    %p86 = scmp.eq.s32.totalorder %s85, 0
    %s88 = sadd.s32 %s87, 1
    %s89 = scalar_select %p86, %s87, %s88
    %p92 = pneg %p86
    %p93 = scmp.eq.s32.totalorder %s9, 1
    %p94 = por %p92, %p93
    %p95 = scmp.ne.s32.totalorder %s87, %s90
    %p96 = scmp.eq.s32.totalorder %s9, 0
    %p97 = por %p95, %p96
    %p98 = scmp.ne.s32.totalorder %s87, %s90
    %p99 = scmp.eq.s32.totalorder %s14, 1
    %p100 = por %p98, %p99
    %p101 = scmp.ne.s32.totalorder %s90, %s91
    %p102 = scmp.eq.s32.totalorder %s14, 0
    %p103 = por %p101, %p102
    %p104 = scmp.ne.s32.totalorder %s90, %s91
    %p105 = scmp.eq.s32.totalorder %s15, 1
    %p106 = por %p104, %p105
    %p108 = scmp.ne.s32.totalorder %s91, %s107
    %p109 = scmp.eq.s32.totalorder %s15, 0
    %p110 = por %p108, %p109
    %p111 = scmp.le.s32.totalorder 1, %s9
    %p112 = scmp.lt.s32.totalorder %s9, 3
    %p113 = pnand %p111, %p112
    %p114 = pneg %p113
    // Predicated region
    $region9: #{resnet_block_forward.5} parent=5 // pred_check
      _
    $region10: #{resnet_block_forward.5} parent=5 // pred_check_branch
      %116 = sbr.rel (%p113) target = $region12
    $region11: #{resnet_block_forward.5} parent=5 // pred_region
      %s117 = ssub.s32 %s9, 1
      // Predicated region
      $region13: #{resnet_block_forward.5} parent=11 // pred_check
        %p118 = pneg %p56
      $region14: #{resnet_block_forward.5} parent=11 // pred_check_branch
        %120 = sbr.rel (%p118) target = $region16
      $region15: #{resnet_block_forward.5} parent=11 // pred_region
        _
      $region16: #{resnet_block_forward.5} parent=11 // pred_fallthru
        _
      // Predicated region
      $region17: #{resnet_block_forward.5} parent=11 // pred_check
        %p121 = pneg %p77
      $region18: #{resnet_block_forward.5} parent=11 // pred_check_branch
        %123 = sbr.rel (%p121) target = $region20
      $region19: #{resnet_block_forward.5} parent=11 // pred_region
        _
      $region20: #{resnet_block_forward.5} parent=11 // pred_fallthru
        _
    $region12: #{resnet_block_forward.5} parent=5 // pred_fallthru
      _
    %p124 = scmp.lt.s32.totalorder %s9, 2
    // Predicated region
    $region21: #{resnet_block_forward.5} parent=5 // pred_check
      %p125 = pneg %p124
    $region22: #{resnet_block_forward.5} parent=5 // pred_check_branch
      %127 = sbr.rel (%p125) target = $region24
    $region23: #{resnet_block_forward.5} parent=5 // pred_region
      // Predicated region
      $region25: #{resnet_block_forward.5} parent=23 // pred_check
        %p128 = pneg %p29
      $region26: #{resnet_block_forward.5} parent=23 // pred_check_branch
        %130 = sbr.rel (%p128) target = $region28
      $region27: #{resnet_block_forward.5} parent=23 // pred_region
        %s131 = smul.u32 2, %s9
        %p132 = scmp.lt.s32.totalorder %s131, 3
        %s133 = scalar_select %p132, %s131, 3
        %s134 = smul.addr %s133, 8
        %s135 = scalar_lea.vmem %s0, %s134
        %s136 = smul.u32 2, %s9
      $region28: #{resnet_block_forward.5} parent=23 // pred_fallthru
        _
    $region24: #{resnet_block_forward.5} parent=5 // pred_fallthru
      _
    %p137 = scmp.le.s32.totalorder 1, %s9
    %p138 = scmp.lt.s32.totalorder %s9, 3
    %p139 = pnand %p137, %p138
    %p140 = pneg %p139
    // Predicated region
    $region29: #{resnet_block_forward.5} parent=5 // pred_check
      _
    $region30: #{resnet_block_forward.5} parent=5 // pred_check_branch
      %142 = sbr.rel (%p139) target = $region32
    $region31: #{resnet_block_forward.5} parent=5 // pred_region
      %s143 = ssub.s32 %s9, 1
      %s144 = smul.u32 2, %s14
      %p145 = scmp.lt.s32.totalorder %s144, 3
      %s146 = scalar_select %p145, %s144, 3
      %s147 = smul.addr %s146, 8
      %s148 = scalar_lea.vmem %s0, %s147
      %p149 = pneg %p35
      %p150 = pneg %p32
      %p151 = pneg %p56
      %p152 = pneg %p53
      %p153 = pneg %p77
      %p154 = pneg %p74
      %p155 = pneg %p103
      %p156 = pneg %p100
      %s157 = smul.u32 2, %s14
      %p158 = scmp.lt.s32.totalorder %s157, 3
      %s159 = scalar_select %p158, %s157, 3
      %s160 = smul.addr %s159, 8
      %s161 = scalar_lea.vmem %s3, %s160
      %s162 = smul.u32 2, %s14
      %p163 = scmp.lt.s32.totalorder %s162, 3
      %s164 = scalar_select %p163, %s162, 3
      %s165 = smul.addr %s164, 8
      %s166 = scalar_lea.vmem %s0, %s165
      %s167 = smul.u32 2, %s14
      %s168 = smul.u32 2, %s14
      %p169 = scmp.lt.s32.totalorder %s168, 3
      %s170 = scalar_select %p169, %s168, 3
      %s171 = smul.addr %s170, 8
      %s172 = scalar_lea.vmem %s3, %s171
      %s173 = smul.u32 2, %s14
      %v174 = vld [vmem:[%s166] sm:$0xff]
      %v175 = vld [vmem:[%s166 + $0x8] sm:$0xff]
      %v176 = vld [vmem:[%s1] sm:$0x1]
      %v178 = vperm.slane %v176, 0
      %v180 = vmul.f32 %v174, %v178
      %v181 = vmul.f32 %v175, %v178
      %v182 = vld [vmem:[%s2] sm:$0x1]
      %v184 = vperm.slane %v182, 0
      %v186 = vadd.f32 %v180, %v184
      %v187 = vadd.f32 %v181, %v184
      %v188 = vmax.f32 %v186, 0.0
      %v189 = vmax.f32 %v187, 0.0
      %190 = vst [vmem:[%s172] sm:$0xff] %v188
      %191 = vst [vmem:[%s172 + $0x8] sm:$0xff] %v189
      %s192 = smul.u32 2, %s14
      %p193 = scmp.lt.s32.totalorder %s192, 3
      %s194 = scalar_select %p193, %s192, 3
      %s195 = smul.addr %s194, 8
      %s196 = scalar_lea.vmem %s3, %s195
      // Predicated region
      $region33: #{resnet_block_forward.5} parent=31 // pred_check
        %p197 = pneg %p100
      $region34: #{resnet_block_forward.5} parent=31 // pred_check_branch
        %199 = sbr.rel (%p197) target = $region36
      $region35: #{resnet_block_forward.5} parent=31 // pred_region
        %s200 = smul.u32 2, %s14
      $region36: #{resnet_block_forward.5} parent=31 // pred_fallthru
        _
    $region32: #{resnet_block_forward.5} parent=5 // pred_fallthru
      _
    %p201 = scmp.le.s32.totalorder 2, %s9
    // Predicated region
    $region37: #{resnet_block_forward.5} parent=5 // pred_check
      %p202 = pneg %p201
    $region38: #{resnet_block_forward.5} parent=5 // pred_check_branch
      %204 = sbr.rel (%p202) target = $region40
    $region39: #{resnet_block_forward.5} parent=5 // pred_region
      %s205 = ssub.s32 %s9, 2
      // Predicated region
      $region41: #{resnet_block_forward.5} parent=39 // pred_check
        %p206 = pneg %p106
      $region42: #{resnet_block_forward.5} parent=39 // pred_check_branch
        %208 = sbr.rel (%p206) target = $region44
      $region43: #{resnet_block_forward.5} parent=39 // pred_region
        %s209 = smul.u32 2, %s15
        %p210 = scmp.lt.s32.totalorder %s209, 3
        %s211 = scalar_select %p210, %s209, 3
        %s212 = smul.addr %s211, 8
        %s213 = scalar_lea.vmem %s3, %s212
      $region44: #{resnet_block_forward.5} parent=39 // pred_fallthru
        _
    $region40: #{resnet_block_forward.5} parent=5 // pred_fallthru
      _
  $region6: #{resnet_block_forward.5} parent=0 // loop_footer
    %s13 = sadd.s32 1, %s9
  $region7: #{resnet_block_forward.5} parent=0 // loop_footer_branch
    %8 = sbr.rel target = $region3
  $region8: #{resnet_block_forward.5} parent=0 // loop_exit
    _

// kernel: resnet_block_forward.7
$region0: #{resnet_block_forward.7}
  #allocation0 [shape = 'u32[]', space=smem, size = 0x4, offset = 0x4, fixed_abs, tag = 'smem constant byte address 0x4 - core index']
  #allocation1 [shape = 'u32[72,128]{1,0:T(1,128)}', space=vmem, size = 0x9000, scoped, tag = 'internal scratch']
  %s0 = inlined_call_operand.vmem [shape: f32[32,128], index: 0, kind: input, shape index: {}]
  %s1 = inlined_call_operand.vmem [shape: f32[32,128], index: 1, kind: input, shape index: {}]
  %s2 = inlined_call_operand.vmem [shape: f32[1,128], index: 2, kind: input, shape index: {}]
  %s3 = inlined_call_operand.vmem [shape: f32[1,128], index: 3, kind: input, shape index: {}]
  %s4 = inlined_call_operand.vmem [shape: f32[1,128], index: 4, kind: input, shape index: {}]
  %s5 = inlined_call_operand.vmem [shape: f32[1,128], index: 5, kind: input, shape index: {}]
  %s6 = inlined_call_operand.vmem [shape: f32[32,128], index: 6, kind: output, shape index: {}]
  %s7 = sld [smem:[#allocation0]]
  $region57: #{resnet_block_forward.7} parent=0
    _
  %s9 = ssub.s32 1, %s7
  %s10 = scalar_select 0, %s9, %s7
  loop: start=0, step=1, limit=4
  $region2: #{resnet_block_forward.7} parent=0 // loop_pre_header
    _
  $region3: #{resnet_block_forward.7} parent=0 // loop_header
    %s12 = sphi 0, %s16
    %p13 = scmp.ge.s32.totalorder %s12, 4
    %s22 = sphi 0, %s24
    %s25 = sphi 0, %s22
    %s26 = sphi 0, %s25
    %s42 = sphi 0, %s26
    %s48 = sphi 0, %s50
    %s51 = sphi 0, %s48
    %s52 = sphi 0, %s51
    %s68 = sphi 0, %s52
    %s72 = sphi 0, %s72
    %s74 = sphi 0, %s72
    %s75 = sphi 0, %s74
    %s89 = sphi 0, %s75
    %s93 = sphi 0, %s93
    %s95 = sphi 0, %s93
    %s96 = sphi 0, %s95
    %s110 = sphi 0, %s96
    %s114 = sphi 0, %s114
    %s116 = sphi 0, %s114
    %s117 = sphi 0, %s116
    %s131 = sphi 0, %s117
    %s135 = sphi 0, %s135
    %s137 = sphi 0, %s135
    %s138 = sphi 0, %s137
    %s152 = sphi 0, %s138
    %s158 = sphi 0, %s160
    %s161 = sphi 0, %s158
    %s162 = sphi 0, %s161
    %s178 = sphi 0, %s162
  $region4: #{resnet_block_forward.7} parent=0 // loop_header_branch
    %15 = sbr.rel (%p13) target = $region8
  $region5: #{resnet_block_forward.7} parent=0 // loop_body
    %s17 = ssub.s32 %s12, 1
    %s18 = ssub.s32 %s12, 2
    %s19 = sadd.s32 %s12, 1
    %s20 = ssub.s32 %s12, %s19
    %p21 = scmp.eq.s32.totalorder %s20, 0
    %s23 = sadd.s32 %s22, 1
    %s24 = scalar_select %p21, %s22, %s23
    %p27 = pneg %p21
    %p28 = scmp.eq.s32.totalorder %s12, 1
    %p29 = por %p27, %p28
    %p30 = scmp.ne.s32.totalorder %s22, %s25
    %p31 = scmp.eq.s32.totalorder %s12, 0
    %p32 = por %p30, %p31
    %p33 = scmp.ne.s32.totalorder %s22, %s25
    %p34 = scmp.eq.s32.totalorder %s17, 1
    %p35 = por %p33, %p34
    %p36 = scmp.ne.s32.totalorder %s25, %s26
    %p37 = scmp.eq.s32.totalorder %s17, 0
    %p38 = por %p36, %p37
    %p39 = scmp.ne.s32.totalorder %s25, %s26
    %p40 = scmp.eq.s32.totalorder %s18, 1
    %p41 = por %p39, %p40
    %p43 = scmp.ne.s32.totalorder %s26, %s42
    %p44 = scmp.eq.s32.totalorder %s18, 0
    %p45 = por %p43, %p44
    %s46 = ssub.s32 %s12, %s19
    %p47 = scmp.eq.s32.totalorder %s46, 0
    %s49 = sadd.s32 %s48, 1
    %s50 = scalar_select %p47, %s48, %s49
    %p53 = pneg %p47
    %p54 = scmp.eq.s32.totalorder %s12, 1
    %p55 = por %p53, %p54
    %p56 = scmp.ne.s32.totalorder %s48, %s51
    %p57 = scmp.eq.s32.totalorder %s12, 0
    %p58 = por %p56, %p57
    %p59 = scmp.ne.s32.totalorder %s48, %s51
    %p60 = scmp.eq.s32.totalorder %s17, 1
    %p61 = por %p59, %p60
    %p62 = scmp.ne.s32.totalorder %s51, %s52
    %p63 = scmp.eq.s32.totalorder %s17, 0
    %p64 = por %p62, %p63
    %p65 = scmp.ne.s32.totalorder %s51, %s52
    %p66 = scmp.eq.s32.totalorder %s18, 1
    %p67 = por %p65, %p66
    %p69 = scmp.ne.s32.totalorder %s52, %s68
    %p70 = scmp.eq.s32.totalorder %s18, 0
    %p71 = por %p69, %p70
    %s73 = sadd.s32 %s72, 1
    %p76 = scmp.eq.s32.totalorder %s12, 1
    %p77 = scmp.ne.s32.totalorder %s72, %s74
    %p78 = scmp.eq.s32.totalorder %s12, 0
    %p79 = por %p77, %p78
    %p80 = scmp.ne.s32.totalorder %s72, %s74
    %p81 = scmp.eq.s32.totalorder %s17, 1
    %p82 = por %p80, %p81
    %p83 = scmp.ne.s32.totalorder %s74, %s75
    %p84 = scmp.eq.s32.totalorder %s17, 0
    %p85 = por %p83, %p84
    %p86 = scmp.ne.s32.totalorder %s74, %s75
    %p87 = scmp.eq.s32.totalorder %s18, 1
    %p88 = por %p86, %p87
    %p90 = scmp.ne.s32.totalorder %s75, %s89
    %p91 = scmp.eq.s32.totalorder %s18, 0
    %p92 = por %p90, %p91
    %s94 = sadd.s32 %s93, 1
    %p97 = scmp.eq.s32.totalorder %s12, 1
    %p98 = scmp.ne.s32.totalorder %s93, %s95
    %p99 = scmp.eq.s32.totalorder %s12, 0
    %p100 = por %p98, %p99
    %p101 = scmp.ne.s32.totalorder %s93, %s95
    %p102 = scmp.eq.s32.totalorder %s17, 1
    %p103 = por %p101, %p102
    %p104 = scmp.ne.s32.totalorder %s95, %s96
    %p105 = scmp.eq.s32.totalorder %s17, 0
    %p106 = por %p104, %p105
    %p107 = scmp.ne.s32.totalorder %s95, %s96
    %p108 = scmp.eq.s32.totalorder %s18, 1
    %p109 = por %p107, %p108
    %p111 = scmp.ne.s32.totalorder %s96, %s110
    %p112 = scmp.eq.s32.totalorder %s18, 0
    %p113 = por %p111, %p112
    %s115 = sadd.s32 %s114, 1
    %p118 = scmp.eq.s32.totalorder %s12, 1
    %p119 = scmp.ne.s32.totalorder %s114, %s116
    %p120 = scmp.eq.s32.totalorder %s12, 0
    %p121 = por %p119, %p120
    %p122 = scmp.ne.s32.totalorder %s114, %s116
    %p123 = scmp.eq.s32.totalorder %s17, 1
    %p124 = por %p122, %p123
    %p125 = scmp.ne.s32.totalorder %s116, %s117
    %p126 = scmp.eq.s32.totalorder %s17, 0
    %p127 = por %p125, %p126
    %p128 = scmp.ne.s32.totalorder %s116, %s117
    %p129 = scmp.eq.s32.totalorder %s18, 1
    %p130 = por %p128, %p129
    %p132 = scmp.ne.s32.totalorder %s117, %s131
    %p133 = scmp.eq.s32.totalorder %s18, 0
    %p134 = por %p132, %p133
    %s136 = sadd.s32 %s135, 1
    %p139 = scmp.eq.s32.totalorder %s12, 1
    %p140 = scmp.ne.s32.totalorder %s135, %s137
    %p141 = scmp.eq.s32.totalorder %s12, 0
    %p142 = por %p140, %p141
    %p143 = scmp.ne.s32.totalorder %s135, %s137
    %p144 = scmp.eq.s32.totalorder %s17, 1
    %p145 = por %p143, %p144
    %p146 = scmp.ne.s32.totalorder %s137, %s138
    %p147 = scmp.eq.s32.totalorder %s17, 0
    %p148 = por %p146, %p147
    %p149 = scmp.ne.s32.totalorder %s137, %s138
    %p150 = scmp.eq.s32.totalorder %s18, 1
    %p151 = por %p149, %p150
    %p153 = scmp.ne.s32.totalorder %s138, %s152
    %p154 = scmp.eq.s32.totalorder %s18, 0
    %p155 = por %p153, %p154
    %s156 = ssub.s32 %s12, %s19
    %p157 = scmp.eq.s32.totalorder %s156, 0
    %s159 = sadd.s32 %s158, 1
    %s160 = scalar_select %p157, %s158, %s159
    %p163 = pneg %p157
    %p164 = scmp.eq.s32.totalorder %s12, 1
    %p165 = por %p163, %p164
    %p166 = scmp.ne.s32.totalorder %s158, %s161
    %p167 = scmp.eq.s32.totalorder %s12, 0
    %p168 = por %p166, %p167
    %p169 = scmp.ne.s32.totalorder %s158, %s161
    %p170 = scmp.eq.s32.totalorder %s17, 1
    %p171 = por %p169, %p170
    %p172 = scmp.ne.s32.totalorder %s161, %s162
    %p173 = scmp.eq.s32.totalorder %s17, 0
    %p174 = por %p172, %p173
    %p175 = scmp.ne.s32.totalorder %s161, %s162
    %p176 = scmp.eq.s32.totalorder %s18, 1
    %p177 = por %p175, %p176
    %p179 = scmp.ne.s32.totalorder %s162, %s178
    %p180 = scmp.eq.s32.totalorder %s18, 0
    %p181 = por %p179, %p180
    %p182 = scmp.le.s32.totalorder 1, %s12
    %p183 = scmp.lt.s32.totalorder %s12, 3
    %p184 = pnand %p182, %p183
    %p185 = pneg %p184
    // Predicated region
    $region9: #{resnet_block_forward.7} parent=5 // pred_check
      _
    $region10: #{resnet_block_forward.7} parent=5 // pred_check_branch
      %187 = sbr.rel (%p184) target = $region12
    $region11: #{resnet_block_forward.7} parent=5 // pred_region
      %s188 = ssub.s32 %s12, 1
      // Predicated region
      $region13: #{resnet_block_forward.7} parent=11 // pred_check
        %p189 = pneg %p85
      $region14: #{resnet_block_forward.7} parent=11 // pred_check_branch
        %191 = sbr.rel (%p189) target = $region16
      $region15: #{resnet_block_forward.7} parent=11 // pred_region
        _
      $region16: #{resnet_block_forward.7} parent=11 // pred_fallthru
        _
      // Predicated region
      $region17: #{resnet_block_forward.7} parent=11 // pred_check
        %p192 = pneg %p106
      $region18: #{resnet_block_forward.7} parent=11 // pred_check_branch
        %194 = sbr.rel (%p192) target = $region20
      $region19: #{resnet_block_forward.7} parent=11 // pred_region
        _
      $region20: #{resnet_block_forward.7} parent=11 // pred_fallthru
        _
      // Predicated region
      $region21: #{resnet_block_forward.7} parent=11 // pred_check
        %p195 = pneg %p127
      $region22: #{resnet_block_forward.7} parent=11 // pred_check_branch
        %197 = sbr.rel (%p195) target = $region24
      $region23: #{resnet_block_forward.7} parent=11 // pred_region
        _
      $region24: #{resnet_block_forward.7} parent=11 // pred_fallthru
        _
      // Predicated region
      $region25: #{resnet_block_forward.7} parent=11 // pred_check
        %p198 = pneg %p148
      $region26: #{resnet_block_forward.7} parent=11 // pred_check_branch
        %200 = sbr.rel (%p198) target = $region28
      $region27: #{resnet_block_forward.7} parent=11 // pred_region
        _
      $region28: #{resnet_block_forward.7} parent=11 // pred_fallthru
        _
    $region12: #{resnet_block_forward.7} parent=5 // pred_fallthru
      _
    %p201 = scmp.lt.s32.totalorder %s12, 2
    // Predicated region
    $region29: #{resnet_block_forward.7} parent=5 // pred_check
      %p202 = pneg %p201
    $region30: #{resnet_block_forward.7} parent=5 // pred_check_branch
      %204 = sbr.rel (%p202) target = $region32
    $region31: #{resnet_block_forward.7} parent=5 // pred_region
      // Predicated region
      $region33: #{resnet_block_forward.7} parent=31 // pred_check
        %p205 = pneg %p32
      $region34: #{resnet_block_forward.7} parent=31 // pred_check_branch
        %207 = sbr.rel (%p205) target = $region36
      $region35: #{resnet_block_forward.7} parent=31 // pred_region
        %s208 = smul.u32 2, %s12
        %p209 = scmp.lt.s32.totalorder %s208, 3
        %s210 = scalar_select %p209, %s208, 3
        %s211 = smul.addr %s210, 8
        %s212 = scalar_lea.vmem %s0, %s211
        %s213 = smul.u32 2, %s12
      $region36: #{resnet_block_forward.7} parent=31 // pred_fallthru
        _
      // Predicated region
      $region37: #{resnet_block_forward.7} parent=31 // pred_check
        %p214 = pneg %p58
      $region38: #{resnet_block_forward.7} parent=31 // pred_check_branch
        %216 = sbr.rel (%p214) target = $region40
      $region39: #{resnet_block_forward.7} parent=31 // pred_region
        %s217 = smul.u32 2, %s12
        %p218 = scmp.lt.s32.totalorder %s217, 3
        %s219 = scalar_select %p218, %s217, 3
        %s220 = smul.addr %s219, 8
        %s221 = scalar_lea.vmem %s1, %s220
        %s222 = smul.u32 2, %s12
      $region40: #{resnet_block_forward.7} parent=31 // pred_fallthru
        _
    $region32: #{resnet_block_forward.7} parent=5 // pred_fallthru
      _
    %p223 = scmp.le.s32.totalorder 1, %s12
    %p224 = scmp.lt.s32.totalorder %s12, 3
    %p225 = pnand %p223, %p224
    %p226 = pneg %p225
    // Predicated region
    $region41: #{resnet_block_forward.7} parent=5 // pred_check
      _
    $region42: #{resnet_block_forward.7} parent=5 // pred_check_branch
      %228 = sbr.rel (%p225) target = $region44
    $region43: #{resnet_block_forward.7} parent=5 // pred_region
      %s229 = ssub.s32 %s12, 1
      %s230 = smul.u32 2, %s17
      %p231 = scmp.lt.s32.totalorder %s230, 3
      %s232 = scalar_select %p231, %s230, 3
      %s233 = smul.addr %s232, 8
      %s234 = scalar_lea.vmem %s0, %s233
      %p235 = pneg %p38
      %p236 = pneg %p35
      %s237 = smul.u32 2, %s17
      %p238 = scmp.lt.s32.totalorder %s237, 3
      %s239 = scalar_select %p238, %s237, 3
      %s240 = smul.addr %s239, 8
      %s241 = scalar_lea.vmem %s1, %s240
      %p242 = pneg %p64
      %p243 = pneg %p61
      %p244 = pneg %p85
      %p245 = pneg %p82
      %p246 = pneg %p106
      %p247 = pneg %p103
      %p248 = pneg %p127
      %p249 = pneg %p124
      %p250 = pneg %p148
      %p251 = pneg %p145
      %p252 = pneg %p174
      %p253 = pneg %p171
      %s254 = smul.u32 2, %s17
      %p255 = scmp.lt.s32.totalorder %s254, 3
      %s256 = scalar_select %p255, %s254, 3
      %s257 = smul.addr %s256, 8
      %s258 = scalar_lea.vmem %s6, %s257
      %s259 = smul.u32 2, %s17
      %p260 = scmp.lt.s32.totalorder %s259, 3
      %s261 = scalar_select %p260, %s259, 3
      %s262 = smul.addr %s261, 8
      %s263 = scalar_lea.vmem %s0, %s262
      %s264 = smul.u32 2, %s17
      %s265 = smul.u32 2, %s17
      %p266 = scmp.lt.s32.totalorder %s265, 3
      %s267 = scalar_select %p266, %s265, 3
      %s268 = smul.addr %s267, 8
      %s269 = scalar_lea.vmem %s1, %s268
      %s270 = smul.u32 2, %s17
      %s271 = smul.u32 2, %s17
      %p272 = scmp.lt.s32.totalorder %s271, 3
      %s273 = scalar_select %p272, %s271, 3
      %s274 = smul.addr %s273, 8
      %s275 = scalar_lea.vmem %s6, %s274
      %s276 = smul.u32 2, %s17
      %v277 = vld [vmem:[%s263] sm:$0xff]
      %v278 = vld [vmem:[%s263 + $0x8] sm:$0xff]
      %v279 = vld [vmem:[%s2] sm:$0x1]
      %v281 = vperm.slane %v279, 0
      %v283 = vmul.f32 %v277, %v281
      %v284 = vmul.f32 %v278, %v281
      %v285 = vld [vmem:[%s3] sm:$0x1]
      %v287 = vperm.slane %v285, 0
      %v289 = vadd.f32 %v283, %v287
      %v290 = vadd.f32 %v284, %v287
      %v291 = vld [vmem:[%s269] sm:$0xff]
      %v292 = vld [vmem:[%s269 + $0x8] sm:$0xff]
      %v293 = vld [vmem:[%s4] sm:$0x1]
      %v295 = vperm.slane %v293, 0
      %v297 = vmul.f32 %v291, %v295
      %v298 = vmul.f32 %v292, %v295
      %v299 = vadd.f32 %v289, %v297
      %v300 = vadd.f32 %v290, %v298
      %v301 = vld [vmem:[%s5] sm:$0x1]
      %v303 = vperm.slane %v301, 0
      %v305 = vadd.f32 %v299, %v303
      %v306 = vadd.f32 %v300, %v303
      %307 = vst [vmem:[%s275] sm:$0xff] %v305
      %308 = vst [vmem:[%s275 + $0x8] sm:$0xff] %v306
      %s309 = smul.u32 2, %s17
      %p310 = scmp.lt.s32.totalorder %s309, 3
      %s311 = scalar_select %p310, %s309, 3
      %s312 = smul.addr %s311, 8
      %s313 = scalar_lea.vmem %s6, %s312
      // Predicated region
      $region45: #{resnet_block_forward.7} parent=43 // pred_check
        %p314 = pneg %p171
      $region46: #{resnet_block_forward.7} parent=43 // pred_check_branch
        %316 = sbr.rel (%p314) target = $region48
      $region47: #{resnet_block_forward.7} parent=43 // pred_region
        %s317 = smul.u32 2, %s17
      $region48: #{resnet_block_forward.7} parent=43 // pred_fallthru
        _
    $region44: #{resnet_block_forward.7} parent=5 // pred_fallthru
      _
    %p318 = scmp.le.s32.totalorder 2, %s12
    // Predicated region
    $region49: #{resnet_block_forward.7} parent=5 // pred_check
      %p319 = pneg %p318
    $region50: #{resnet_block_forward.7} parent=5 // pred_check_branch
      %321 = sbr.rel (%p319) target = $region52
    $region51: #{resnet_block_forward.7} parent=5 // pred_region
      %s322 = ssub.s32 %s12, 2
      // Predicated region
      $region53: #{resnet_block_forward.7} parent=51 // pred_check
        %p323 = pneg %p177
      $region54: #{resnet_block_forward.7} parent=51 // pred_check_branch
        %325 = sbr.rel (%p323) target = $region56
      $region55: #{resnet_block_forward.7} parent=51 // pred_region
        %s326 = smul.u32 2, %s18
        %p327 = scmp.lt.s32.totalorder %s326, 3
        %s328 = scalar_select %p327, %s326, 3
        %s329 = smul.addr %s328, 8
        %s330 = scalar_lea.vmem %s6, %s329
      $region56: #{resnet_block_forward.7} parent=51 // pred_fallthru
        _
    $region52: #{resnet_block_forward.7} parent=5 // pred_fallthru
      _
  $region6: #{resnet_block_forward.7} parent=0 // loop_footer
    %s16 = sadd.s32 1, %s12
  $region7: #{resnet_block_forward.7} parent=0 // loop_footer_branch
    %11 = sbr.rel target = $region3
  $region8: #{resnet_block_forward.7} parent=0 // loop_exit
    _

// kernel: resnet_block_forward.6
$region0: #{resnet_block_forward.6}
  #allocation0 [shape = 'u32[]', space=smem, size = 0x4, offset = 0x4, fixed_abs, tag = 'smem constant byte address 0x4 - core index']
  #allocation1 [shape = 'u32[72,128]{1,0:T(1,128)}', space=vmem, size = 0x9000, scoped, tag = 'internal scratch']
  %s0 = inlined_call_operand.vmem [shape: f32[32,1152], index: 0, kind: input, shape index: {}]
  %s1 = inlined_call_operand.vmem [shape: f32[1152,128], index: 1, kind: input, shape index: {}]
  %s2 = inlined_call_operand.vmem [shape: f32[32,4], index: 2, kind: input, shape index: {}]
  %s3 = inlined_call_operand.vmem [shape: f32[4,128], index: 3, kind: input, shape index: {}]
  %s4 = inlined_call_operand.vmem [shape: f32[32,128], index: 4, kind: output, shape index: {0}]
  %s5 = inlined_call_operand.vmem [shape: f32[32,128], index: 5, kind: output, shape index: {1}]
  %s6 = inlined_call_operand.vmem [shape: f32[16,128], index: 6, kind: output, shape index: {2}]
  %s7 = inlined_call_operand.vmem [shape: f32[16,128], index: 7, kind: output, shape index: {3}]
  %8 = xla_tuple %s4, %s5, %s6, %s7
  %s9 = sld [smem:[#allocation0]]
  $region73: #{resnet_block_forward.6} parent=0
    _
  %s11 = ssub.s32 1, %s9
  %s12 = scalar_select 0, %s11, %s9
  loop: start=0, step=1, limit=4
  $region2: #{resnet_block_forward.6} parent=0 // loop_pre_header
    _
  $region3: #{resnet_block_forward.6} parent=0 // loop_header
    %s14 = sphi 0, %s18
    %p15 = scmp.ge.s32.totalorder %s14, 4
    %s24 = sphi 0, %s26
    %s27 = sphi 0, %s24
    %s28 = sphi 0, %s27
    %s44 = sphi 0, %s28
    %s48 = sphi 0, %s48
    %s50 = sphi 0, %s48
    %s51 = sphi 0, %s50
    %s65 = sphi 0, %s51
    %s71 = sphi 0, %s73
    %s74 = sphi 0, %s71
    %s75 = sphi 0, %s74
    %s91 = sphi 0, %s75
    %s95 = sphi 0, %s95
    %s97 = sphi 0, %s95
    %s98 = sphi 0, %s97
    %s112 = sphi 0, %s98
    %s118 = sphi 0, %s120
    %s121 = sphi 0, %s118
    %s122 = sphi 0, %s121
    %s138 = sphi 0, %s122
    %s144 = sphi 0, %s146
    %s147 = sphi 0, %s144
    %s148 = sphi 0, %s147
    %s164 = sphi 0, %s148
    %s170 = sphi 0, %s172
    %s173 = sphi 0, %s170
    %s174 = sphi 0, %s173
    %s190 = sphi 0, %s174
    %s196 = sphi 0, %s198
    %s199 = sphi 0, %s196
    %s200 = sphi 0, %s199
    %s216 = sphi 0, %s200
  $region4: #{resnet_block_forward.6} parent=0 // loop_header_branch
    %17 = sbr.rel (%p15) target = $region8
  $region5: #{resnet_block_forward.6} parent=0 // loop_body
    %s19 = ssub.s32 %s14, 1
    %s20 = ssub.s32 %s14, 2
    %s21 = sadd.s32 %s14, 1
    %s22 = ssub.s32 %s14, %s21
    %p23 = scmp.eq.s32.totalorder %s22, 0
    %s25 = sadd.s32 %s24, 1
    %s26 = scalar_select %p23, %s24, %s25
    %p29 = pneg %p23
    %p30 = scmp.eq.s32.totalorder %s14, 1
    %p31 = por %p29, %p30
    %p32 = scmp.ne.s32.totalorder %s24, %s27
    %p33 = scmp.eq.s32.totalorder %s14, 0
    %p34 = por %p32, %p33
    %p35 = scmp.ne.s32.totalorder %s24, %s27
    %p36 = scmp.eq.s32.totalorder %s19, 1
    %p37 = por %p35, %p36
    %p38 = scmp.ne.s32.totalorder %s27, %s28
    %p39 = scmp.eq.s32.totalorder %s19, 0
    %p40 = por %p38, %p39
    %p41 = scmp.ne.s32.totalorder %s27, %s28
    %p42 = scmp.eq.s32.totalorder %s20, 1
    %p43 = por %p41, %p42
    %p45 = scmp.ne.s32.totalorder %s28, %s44
    %p46 = scmp.eq.s32.totalorder %s20, 0
    %p47 = por %p45, %p46
    %s49 = sadd.s32 %s48, 1
    %p52 = scmp.eq.s32.totalorder %s14, 1
    %p53 = scmp.ne.s32.totalorder %s48, %s50
    %p54 = scmp.eq.s32.totalorder %s14, 0
    %p55 = por %p53, %p54
    %p56 = scmp.ne.s32.totalorder %s48, %s50
    %p57 = scmp.eq.s32.totalorder %s19, 1
    %p58 = por %p56, %p57
    %p59 = scmp.ne.s32.totalorder %s50, %s51
    %p60 = scmp.eq.s32.totalorder %s19, 0
    %p61 = por %p59, %p60
    %p62 = scmp.ne.s32.totalorder %s50, %s51
    %p63 = scmp.eq.s32.totalorder %s20, 1
    %p64 = por %p62, %p63
    %p66 = scmp.ne.s32.totalorder %s51, %s65
    %p67 = scmp.eq.s32.totalorder %s20, 0
    %p68 = por %p66, %p67
    %s69 = ssub.s32 %s14, %s21
    %p70 = scmp.eq.s32.totalorder %s69, 0
    %s72 = sadd.s32 %s71, 1
    %s73 = scalar_select %p70, %s71, %s72
    %p76 = pneg %p70
    %p77 = scmp.eq.s32.totalorder %s14, 1
    %p78 = por %p76, %p77
    %p79 = scmp.ne.s32.totalorder %s71, %s74
    %p80 = scmp.eq.s32.totalorder %s14, 0
    %p81 = por %p79, %p80
    %p82 = scmp.ne.s32.totalorder %s71, %s74
    %p83 = scmp.eq.s32.totalorder %s19, 1
    %p84 = por %p82, %p83
    %p85 = scmp.ne.s32.totalorder %s74, %s75
    %p86 = scmp.eq.s32.totalorder %s19, 0
    %p87 = por %p85, %p86
    %p88 = scmp.ne.s32.totalorder %s74, %s75
    %p89 = scmp.eq.s32.totalorder %s20, 1
    %p90 = por %p88, %p89
    %p92 = scmp.ne.s32.totalorder %s75, %s91
    %p93 = scmp.eq.s32.totalorder %s20, 0
    %p94 = por %p92, %p93
    %s96 = sadd.s32 %s95, 1
    %p99 = scmp.eq.s32.totalorder %s14, 1
    %p100 = scmp.ne.s32.totalorder %s95, %s97
    %p101 = scmp.eq.s32.totalorder %s14, 0
    %p102 = por %p100, %p101
    %p103 = scmp.ne.s32.totalorder %s95, %s97
    %p104 = scmp.eq.s32.totalorder %s19, 1
    %p105 = por %p103, %p104
    %p106 = scmp.ne.s32.totalorder %s97, %s98
    %p107 = scmp.eq.s32.totalorder %s19, 0
    %p108 = por %p106, %p107
    %p109 = scmp.ne.s32.totalorder %s97, %s98
    %p110 = scmp.eq.s32.totalorder %s20, 1
    %p111 = por %p109, %p110
    %p113 = scmp.ne.s32.totalorder %s98, %s112
    %p114 = scmp.eq.s32.totalorder %s20, 0
    %p115 = por %p113, %p114
    %s116 = ssub.s32 %s14, %s21
    %p117 = scmp.eq.s32.totalorder %s116, 0
    %s119 = sadd.s32 %s118, 1
    %s120 = scalar_select %p117, %s118, %s119
    %p123 = pneg %p117
    %p124 = scmp.eq.s32.totalorder %s14, 1
    %p125 = por %p123, %p124
    %p126 = scmp.ne.s32.totalorder %s118, %s121
    %p127 = scmp.eq.s32.totalorder %s14, 0
    %p128 = por %p126, %p127
    %p129 = scmp.ne.s32.totalorder %s118, %s121
    %p130 = scmp.eq.s32.totalorder %s19, 1
    %p131 = por %p129, %p130
    %p132 = scmp.ne.s32.totalorder %s121, %s122
    %p133 = scmp.eq.s32.totalorder %s19, 0
    %p134 = por %p132, %p133
    %p135 = scmp.ne.s32.totalorder %s121, %s122
    %p136 = scmp.eq.s32.totalorder %s20, 1
    %p137 = por %p135, %p136
    %p139 = scmp.ne.s32.totalorder %s122, %s138
    %p140 = scmp.eq.s32.totalorder %s20, 0
    %p141 = por %p139, %p140
    %s142 = ssub.s32 %s14, %s21
    %p143 = scmp.eq.s32.totalorder %s142, 0
    %s145 = sadd.s32 %s144, 1
    %s146 = scalar_select %p143, %s144, %s145
    %p149 = pneg %p143
    %p150 = scmp.eq.s32.totalorder %s14, 1
    %p151 = por %p149, %p150
    %p152 = scmp.ne.s32.totalorder %s144, %s147
    %p153 = scmp.eq.s32.totalorder %s14, 0
    %p154 = por %p152, %p153
    %p155 = scmp.ne.s32.totalorder %s144, %s147
    %p156 = scmp.eq.s32.totalorder %s19, 1
    %p157 = por %p155, %p156
    %p158 = scmp.ne.s32.totalorder %s147, %s148
    %p159 = scmp.eq.s32.totalorder %s19, 0
    %p160 = por %p158, %p159
    %p161 = scmp.ne.s32.totalorder %s147, %s148
    %p162 = scmp.eq.s32.totalorder %s20, 1
    %p163 = por %p161, %p162
    %p165 = scmp.ne.s32.totalorder %s148, %s164
    %p166 = scmp.eq.s32.totalorder %s20, 0
    %p167 = por %p165, %p166
    %s168 = ssub.s32 %s14, %s21
    %p169 = scmp.eq.s32.totalorder %s168, 0
    %s171 = sadd.s32 %s170, 1
    %s172 = scalar_select %p169, %s170, %s171
    %p175 = pneg %p169
    %p176 = scmp.eq.s32.totalorder %s14, 1
    %p177 = por %p175, %p176
    %p178 = scmp.ne.s32.totalorder %s170, %s173
    %p179 = scmp.eq.s32.totalorder %s14, 0
    %p180 = por %p178, %p179
    %p181 = scmp.ne.s32.totalorder %s170, %s173
    %p182 = scmp.eq.s32.totalorder %s19, 1
    %p183 = por %p181, %p182
    %p184 = scmp.ne.s32.totalorder %s173, %s174
    %p185 = scmp.eq.s32.totalorder %s19, 0
    %p186 = por %p184, %p185
    %p187 = scmp.ne.s32.totalorder %s173, %s174
    %p188 = scmp.eq.s32.totalorder %s20, 1
    %p189 = por %p187, %p188
    %p191 = scmp.ne.s32.totalorder %s174, %s190
    %p192 = scmp.eq.s32.totalorder %s20, 0
    %p193 = por %p191, %p192
    %s194 = ssub.s32 %s14, %s21
    %p195 = scmp.eq.s32.totalorder %s194, 0
    %s197 = sadd.s32 %s196, 1
    %s198 = scalar_select %p195, %s196, %s197
    %p201 = pneg %p195
    %p202 = scmp.eq.s32.totalorder %s14, 1
    %p203 = por %p201, %p202
    %p204 = scmp.ne.s32.totalorder %s196, %s199
    %p205 = scmp.eq.s32.totalorder %s14, 0
    %p206 = por %p204, %p205
    %p207 = scmp.ne.s32.totalorder %s196, %s199
    %p208 = scmp.eq.s32.totalorder %s19, 1
    %p209 = por %p207, %p208
    %p210 = scmp.ne.s32.totalorder %s199, %s200
    %p211 = scmp.eq.s32.totalorder %s19, 0
    %p212 = por %p210, %p211
    %p213 = scmp.ne.s32.totalorder %s199, %s200
    %p214 = scmp.eq.s32.totalorder %s20, 1
    %p215 = por %p213, %p214
    %p217 = scmp.ne.s32.totalorder %s200, %s216
    %p218 = scmp.eq.s32.totalorder %s20, 0
    %p219 = por %p217, %p218
    %p220 = scmp.le.s32.totalorder 1, %s14
    %p221 = scmp.lt.s32.totalorder %s14, 3
    %p222 = pnand %p220, %p221
    %p223 = pneg %p222
    // Predicated region
    $region9: #{resnet_block_forward.6} parent=5 // pred_check
      _
    $region10: #{resnet_block_forward.6} parent=5 // pred_check_branch
      %225 = sbr.rel (%p222) target = $region12
    $region11: #{resnet_block_forward.6} parent=5 // pred_region
      %s226 = ssub.s32 %s14, 1
      // Predicated region
      $region13: #{resnet_block_forward.6} parent=11 // pred_check
        %p227 = pneg %p61
      $region14: #{resnet_block_forward.6} parent=11 // pred_check_branch
        %229 = sbr.rel (%p227) target = $region16
      $region15: #{resnet_block_forward.6} parent=11 // pred_region
        _
      $region16: #{resnet_block_forward.6} parent=11 // pred_fallthru
        _
      // Predicated region
      $region17: #{resnet_block_forward.6} parent=11 // pred_check
        %p230 = pneg %p108
      $region18: #{resnet_block_forward.6} parent=11 // pred_check_branch
        %232 = sbr.rel (%p230) target = $region20
      $region19: #{resnet_block_forward.6} parent=11 // pred_region
        _
      $region20: #{resnet_block_forward.6} parent=11 // pred_fallthru
        _
    $region12: #{resnet_block_forward.6} parent=5 // pred_fallthru
      _
    %p233 = scmp.lt.s32.totalorder %s14, 2
    // Predicated region
    $region21: #{resnet_block_forward.6} parent=5 // pred_check
      %p234 = pneg %p233
    $region22: #{resnet_block_forward.6} parent=5 // pred_check_branch
      %236 = sbr.rel (%p234) target = $region24
    $region23: #{resnet_block_forward.6} parent=5 // pred_region
      // Predicated region
      $region25: #{resnet_block_forward.6} parent=23 // pred_check
        %p237 = pneg %p34
      $region26: #{resnet_block_forward.6} parent=23 // pred_check_branch
        %239 = sbr.rel (%p237) target = $region28
      $region27: #{resnet_block_forward.6} parent=23 // pred_region
        %s240 = smul.u32 2, %s14
        %p241 = scmp.lt.s32.totalorder %s240, 3
        %s242 = scalar_select %p241, %s240, 3
        %s243 = smul.addr %s242, 9
        %s244 = smul.addr %s243, 8
        %s245 = scalar_lea.vmem %s0, %s244
        %s246 = smul.u32 2, %s14
      $region28: #{resnet_block_forward.6} parent=23 // pred_fallthru
        _
      // Predicated region
      $region29: #{resnet_block_forward.6} parent=23 // pred_check
        %p247 = pneg %p81
      $region30: #{resnet_block_forward.6} parent=23 // pred_check_branch
        %249 = sbr.rel (%p247) target = $region32
      $region31: #{resnet_block_forward.6} parent=23 // pred_region
        %s250 = smul.u32 2, %s14
        %p251 = scmp.lt.s32.totalorder %s250, 3
        %s252 = scalar_select %p251, %s250, 3
        %s253 = smul.addr %s252, 8
        %s254 = scalar_lea.vmem %s2, %s253
        %s255 = smul.u32 2, %s14
      $region32: #{resnet_block_forward.6} parent=23 // pred_fallthru
        _
    $region24: #{resnet_block_forward.6} parent=5 // pred_fallthru
      _
    %p256 = scmp.le.s32.totalorder 1, %s14
    %p257 = scmp.lt.s32.totalorder %s14, 3
    %p258 = pnand %p256, %p257
    %p259 = pneg %p258
    // Predicated region
    $region33: #{resnet_block_forward.6} parent=5 // pred_check
      _
    $region34: #{resnet_block_forward.6} parent=5 // pred_check_branch
      %261 = sbr.rel (%p258) target = $region36
    $region35: #{resnet_block_forward.6} parent=5 // pred_region
      %s262 = ssub.s32 %s14, 1
      %s263 = smul.u32 2, %s19
      %p264 = scmp.lt.s32.totalorder %s263, 3
      %s265 = scalar_select %p264, %s263, 3
      %s266 = smul.addr %s265, 9
      %s267 = smul.addr %s266, 8
      %s268 = scalar_lea.vmem %s0, %s267
      %p269 = pneg %p40
      %p270 = pneg %p37
      %p271 = pneg %p61
      %p272 = pneg %p58
      %s273 = smul.u32 2, %s19
      %p274 = scmp.lt.s32.totalorder %s273, 3
      %s275 = scalar_select %p274, %s273, 3
      %s276 = smul.addr %s275, 8
      %s277 = scalar_lea.vmem %s2, %s276
      %p278 = pneg %p87
      %p279 = pneg %p84
      %p280 = pneg %p108
      %p281 = pneg %p105
      %p282 = pneg %p134
      %p283 = pneg %p131
      %s284 = smul.u32 2, %s19
      %p285 = scmp.lt.s32.totalorder %s284, 3
      %s286 = scalar_select %p285, %s284, 3
      %s287 = smul.addr %s286, 8
      %s288 = scalar_lea.vmem %s4, %s287
      %p289 = pneg %p160
      %p290 = pneg %p157
      %s291 = smul.u32 2, %s19
      %p292 = scmp.lt.s32.totalorder %s291, 3
      %s293 = scalar_select %p292, %s291, 3
      %s294 = smul.addr %s293, 8
      %s295 = scalar_lea.vmem %s5, %s294
      %p296 = pneg %p186
      %p297 = pneg %p183
      %p298 = scmp.lt.s32.totalorder %s19, 1
      %s299 = scalar_select %p298, %s19, 1
      %s300 = smul.addr %s299, 8
      %s301 = scalar_lea.vmem %s6, %s300
      %p302 = pneg %p212
      %p303 = pneg %p209
      %p304 = scmp.lt.s32.totalorder %s19, 1
      %s305 = scalar_select %p304, %s19, 1
      %s306 = smul.addr %s305, 8
      %s307 = scalar_lea.vmem %s7, %s306
      %s308 = smul.u32 2, %s19
      %p309 = scmp.lt.s32.totalorder %s308, 3
      %s310 = scalar_select %p309, %s308, 3
      %s311 = smul.addr %s310, 9
      %s312 = smul.addr %s311, 8
      %s313 = scalar_lea.vmem %s0, %s312
      %s314 = smul.u32 2, %s19
      %s315 = smul.u32 2, %s19
      %p316 = scmp.lt.s32.totalorder %s315, 3
      %s317 = scalar_select %p316, %s315, 3
      %s318 = smul.addr %s317, 8
      %s319 = scalar_lea.vmem %s2, %s318
      %s320 = smul.u32 2, %s19
      %s321 = smul.u32 2, %s19
      %p322 = scmp.lt.s32.totalorder %s321, 3
      %s323 = scalar_select %p322, %s321, 3
      %s324 = smul.addr %s323, 8
      %s325 = scalar_lea.vmem %s4, %s324
      %s326 = smul.u32 2, %s19
      %s327 = smul.u32 2, %s19
      %p328 = scmp.lt.s32.totalorder %s327, 3
      %s329 = scalar_select %p328, %s327, 3
      %s330 = smul.addr %s329, 8
      %s331 = scalar_lea.vmem %s5, %s330
      %s332 = smul.u32 2, %s19
      %p333 = scmp.lt.s32.totalorder %s19, 1
      %s334 = scalar_select %p333, %s19, 1
      %s335 = smul.addr %s334, 8
      %s336 = scalar_lea.vmem %s6, %s335
      %p337 = scmp.lt.s32.totalorder %s19, 1
      %s338 = scalar_select %p337, %s19, 1
      %s339 = smul.addr %s338, 8
      %s340 = scalar_lea.vmem %s7, %s339
      %v341 = vld [vmem:[%s313] sm:$0xff]
      %v342 = vld [vmem:[%s313 + $0x8] sm:$0xff]
      %v343 = vld [vmem:[%s313 + $0x10] sm:$0xff]
      %v344 = vld [vmem:[%s313 + $0x18] sm:$0xff]
      %v345 = vld [vmem:[%s313 + $0x20] sm:$0xff]
      %v346 = vld [vmem:[%s313 + $0x28] sm:$0xff]
      %v347 = vld [vmem:[%s313 + $0x30] sm:$0xff]
      %v348 = vld [vmem:[%s313 + $0x38] sm:$0xff]
      %v349 = vld [vmem:[%s313 + $0x40] sm:$0xff]
      %v350 = vld [vmem:[%s313 + $0x48] sm:$0xff]
      %v351 = vld [vmem:[%s313 + $0x50] sm:$0xff]
      %v352 = vld [vmem:[%s313 + $0x58] sm:$0xff]
      %v353 = vld [vmem:[%s313 + $0x60] sm:$0xff]
      %v354 = vld [vmem:[%s313 + $0x68] sm:$0xff]
      %v355 = vld [vmem:[%s313 + $0x70] sm:$0xff]
      %v356 = vld [vmem:[%s313 + $0x78] sm:$0xff]
      %v357 = vld [vmem:[%s313 + $0x80] sm:$0xff]
      %v358 = vld [vmem:[%s313 + $0x88] sm:$0xff]
      %v359 = vld [vmem:[%s1] sm:$0xff]
      %v360 = vld [vmem:[%s1 + $0x8] sm:$0xff]
      %v361 = vld [vmem:[%s1 + $0x10] sm:$0xff]
      %v362 = vld [vmem:[%s1 + $0x18] sm:$0xff]
      %v363 = vld [vmem:[%s1 + $0x20] sm:$0xff]
      %v364 = vld [vmem:[%s1 + $0x28] sm:$0xff]
      %v365 = vld [vmem:[%s1 + $0x30] sm:$0xff]
      %v366 = vld [vmem:[%s1 + $0x38] sm:$0xff]
      %v367 = vld [vmem:[%s1 + $0x40] sm:$0xff]
      %v368 = vld [vmem:[%s1 + $0x48] sm:$0xff]
      %v369 = vld [vmem:[%s1 + $0x50] sm:$0xff]
      %v370 = vld [vmem:[%s1 + $0x58] sm:$0xff]
      %v371 = vld [vmem:[%s1 + $0x60] sm:$0xff]
      %v372 = vld [vmem:[%s1 + $0x68] sm:$0xff]
      %v373 = vld [vmem:[%s1 + $0x70] sm:$0xff]
      %v374 = vld [vmem:[%s1 + $0x78] sm:$0xff]
      %v375 = vld [vmem:[%s1 + $0x80] sm:$0xff]
      %v376 = vld [vmem:[%s1 + $0x88] sm:$0xff]
      %v377 = vld [vmem:[%s1 + $0x90] sm:$0xff]
      %v378 = vld [vmem:[%s1 + $0x98] sm:$0xff]
      %v379 = vld [vmem:[%s1 + $0xa0] sm:$0xff]
      %v380 = vld [vmem:[%s1 + $0xa8] sm:$0xff]
      %v381 = vld [vmem:[%s1 + $0xb0] sm:$0xff]
      %v382 = vld [vmem:[%s1 + $0xb8] sm:$0xff]
      %v383 = vld [vmem:[%s1 + $0xc0] sm:$0xff]
      %v384 = vld [vmem:[%s1 + $0xc8] sm:$0xff]
      %v385 = vld [vmem:[%s1 + $0xd0] sm:$0xff]
      %v386 = vld [vmem:[%s1 + $0xd8] sm:$0xff]
      %v387 = vld [vmem:[%s1 + $0xe0] sm:$0xff]
      %v388 = vld [vmem:[%s1 + $0xe8] sm:$0xff]
      %v389 = vld [vmem:[%s1 + $0xf0] sm:$0xff]
      %v390 = vld [vmem:[%s1 + $0xf8] sm:$0xff]
      %v391 = vld [vmem:[%s1 + $0x100] sm:$0xff]
      %v392 = vld [vmem:[%s1 + $0x108] sm:$0xff]
      %v393 = vld [vmem:[%s1 + $0x110] sm:$0xff]
      %v394 = vld [vmem:[%s1 + $0x118] sm:$0xff]
      %v395 = vld [vmem:[%s1 + $0x120] sm:$0xff]
      %v396 = vld [vmem:[%s1 + $0x128] sm:$0xff]
      %v397 = vld [vmem:[%s1 + $0x130] sm:$0xff]
      %v398 = vld [vmem:[%s1 + $0x138] sm:$0xff]
      %v399 = vld [vmem:[%s1 + $0x140] sm:$0xff]
      %v400 = vld [vmem:[%s1 + $0x148] sm:$0xff]
      %v401 = vld [vmem:[%s1 + $0x150] sm:$0xff]
      %v402 = vld [vmem:[%s1 + $0x158] sm:$0xff]
      %v403 = vld [vmem:[%s1 + $0x160] sm:$0xff]
      %v404 = vld [vmem:[%s1 + $0x168] sm:$0xff]
      %v405 = vld [vmem:[%s1 + $0x170] sm:$0xff]
      %v406 = vld [vmem:[%s1 + $0x178] sm:$0xff]
      %v407 = vld [vmem:[%s1 + $0x180] sm:$0xff]
      %v408 = vld [vmem:[%s1 + $0x188] sm:$0xff]
      %v409 = vld [vmem:[%s1 + $0x190] sm:$0xff]
      %v410 = vld [vmem:[%s1 + $0x198] sm:$0xff]
      %v411 = vld [vmem:[%s1 + $0x1a0] sm:$0xff]
      %v412 = vld [vmem:[%s1 + $0x1a8] sm:$0xff]
      %v413 = vld [vmem:[%s1 + $0x1b0] sm:$0xff]
      %v414 = vld [vmem:[%s1 + $0x1b8] sm:$0xff]
      %v415 = vld [vmem:[%s1 + $0x1c0] sm:$0xff]
      %v416 = vld [vmem:[%s1 + $0x1c8] sm:$0xff]
      %v417 = vld [vmem:[%s1 + $0x1d0] sm:$0xff]
      %v418 = vld [vmem:[%s1 + $0x1d8] sm:$0xff]
      %v419 = vld [vmem:[%s1 + $0x1e0] sm:$0xff]
      %v420 = vld [vmem:[%s1 + $0x1e8] sm:$0xff]
      %v421 = vld [vmem:[%s1 + $0x1f0] sm:$0xff]
      %v422 = vld [vmem:[%s1 + $0x1f8] sm:$0xff]
      %v423 = vld [vmem:[%s1 + $0x200] sm:$0xff]
      %v424 = vld [vmem:[%s1 + $0x208] sm:$0xff]
      %v425 = vld [vmem:[%s1 + $0x210] sm:$0xff]
      %v426 = vld [vmem:[%s1 + $0x218] sm:$0xff]
      %v427 = vld [vmem:[%s1 + $0x220] sm:$0xff]
      %v428 = vld [vmem:[%s1 + $0x228] sm:$0xff]
      %v429 = vld [vmem:[%s1 + $0x230] sm:$0xff]
      %v430 = vld [vmem:[%s1 + $0x238] sm:$0xff]
      %v431 = vld [vmem:[%s1 + $0x240] sm:$0xff]
      %v432 = vld [vmem:[%s1 + $0x248] sm:$0xff]
      %v433 = vld [vmem:[%s1 + $0x250] sm:$0xff]
      %v434 = vld [vmem:[%s1 + $0x258] sm:$0xff]
      %v435 = vld [vmem:[%s1 + $0x260] sm:$0xff]
      %v436 = vld [vmem:[%s1 + $0x268] sm:$0xff]
      %v437 = vld [vmem:[%s1 + $0x270] sm:$0xff]
      %v438 = vld [vmem:[%s1 + $0x278] sm:$0xff]
      %v439 = vld [vmem:[%s1 + $0x280] sm:$0xff]
      %v440 = vld [vmem:[%s1 + $0x288] sm:$0xff]
      %v441 = vld [vmem:[%s1 + $0x290] sm:$0xff]
      %v442 = vld [vmem:[%s1 + $0x298] sm:$0xff]
      %v443 = vld [vmem:[%s1 + $0x2a0] sm:$0xff]
      %v444 = vld [vmem:[%s1 + $0x2a8] sm:$0xff]
      %v445 = vld [vmem:[%s1 + $0x2b0] sm:$0xff]
      %v446 = vld [vmem:[%s1 + $0x2b8] sm:$0xff]
      %v447 = vld [vmem:[%s1 + $0x2c0] sm:$0xff]
      %v448 = vld [vmem:[%s1 + $0x2c8] sm:$0xff]
      %v449 = vld [vmem:[%s1 + $0x2d0] sm:$0xff]
      %v450 = vld [vmem:[%s1 + $0x2d8] sm:$0xff]
      %v451 = vld [vmem:[%s1 + $0x2e0] sm:$0xff]
      %v452 = vld [vmem:[%s1 + $0x2e8] sm:$0xff]
      %v453 = vld [vmem:[%s1 + $0x2f0] sm:$0xff]
      %v454 = vld [vmem:[%s1 + $0x2f8] sm:$0xff]
      %v455 = vld [vmem:[%s1 + $0x300] sm:$0xff]
      %v456 = vld [vmem:[%s1 + $0x308] sm:$0xff]
      %v457 = vld [vmem:[%s1 + $0x310] sm:$0xff]
      %v458 = vld [vmem:[%s1 + $0x318] sm:$0xff]
      %v459 = vld [vmem:[%s1 + $0x320] sm:$0xff]
      %v460 = vld [vmem:[%s1 + $0x328] sm:$0xff]
      %v461 = vld [vmem:[%s1 + $0x330] sm:$0xff]
      %v462 = vld [vmem:[%s1 + $0x338] sm:$0xff]
      %v463 = vld [vmem:[%s1 + $0x340] sm:$0xff]
      %v464 = vld [vmem:[%s1 + $0x348] sm:$0xff]
      %v465 = vld [vmem:[%s1 + $0x350] sm:$0xff]
      %v466 = vld [vmem:[%s1 + $0x358] sm:$0xff]
      %v467 = vld [vmem:[%s1 + $0x360] sm:$0xff]
      %v468 = vld [vmem:[%s1 + $0x368] sm:$0xff]
      %v469 = vld [vmem:[%s1 + $0x370] sm:$0xff]
      %v470 = vld [vmem:[%s1 + $0x378] sm:$0xff]
      %v471 = vld [vmem:[%s1 + $0x380] sm:$0xff]
      %v472 = vld [vmem:[%s1 + $0x388] sm:$0xff]
      %v473 = vld [vmem:[%s1 + $0x390] sm:$0xff]
      %v474 = vld [vmem:[%s1 + $0x398] sm:$0xff]
      %v475 = vld [vmem:[%s1 + $0x3a0] sm:$0xff]
      %v476 = vld [vmem:[%s1 + $0x3a8] sm:$0xff]
      %v477 = vld [vmem:[%s1 + $0x3b0] sm:$0xff]
      %v478 = vld [vmem:[%s1 + $0x3b8] sm:$0xff]
      %v479 = vld [vmem:[%s1 + $0x3c0] sm:$0xff]
      %v480 = vld [vmem:[%s1 + $0x3c8] sm:$0xff]
      %v481 = vld [vmem:[%s1 + $0x3d0] sm:$0xff]
      %v482 = vld [vmem:[%s1 + $0x3d8] sm:$0xff]
      %v483 = vld [vmem:[%s1 + $0x3e0] sm:$0xff]
      %v484 = vld [vmem:[%s1 + $0x3e8] sm:$0xff]
      %v485 = vld [vmem:[%s1 + $0x3f0] sm:$0xff]
      %v486 = vld [vmem:[%s1 + $0x3f8] sm:$0xff]
      %v487 = vld [vmem:[%s1 + $0x400] sm:$0xff]
      %v488 = vld [vmem:[%s1 + $0x408] sm:$0xff]
      %v489 = vld [vmem:[%s1 + $0x410] sm:$0xff]
      %v490 = vld [vmem:[%s1 + $0x418] sm:$0xff]
      %v491 = vld [vmem:[%s1 + $0x420] sm:$0xff]
      %v492 = vld [vmem:[%s1 + $0x428] sm:$0xff]
      %v493 = vld [vmem:[%s1 + $0x430] sm:$0xff]
      %v494 = vld [vmem:[%s1 + $0x438] sm:$0xff]
      %v495 = vld [vmem:[%s1 + $0x440] sm:$0xff]
      %v496 = vld [vmem:[%s1 + $0x448] sm:$0xff]
      %v497 = vld [vmem:[%s1 + $0x450] sm:$0xff]
      %v498 = vld [vmem:[%s1 + $0x458] sm:$0xff]
      %v499 = vld [vmem:[%s1 + $0x460] sm:$0xff]
      %v500 = vld [vmem:[%s1 + $0x468] sm:$0xff]
      %v501 = vld [vmem:[%s1 + $0x470] sm:$0xff]
      %v502 = vld [vmem:[%s1 + $0x478] sm:$0xff]
      %503 = vmatpush.msra.mxu0 %v374
      %504 = vmatpush.msra.mxu0 %v373
      %505 = vmatpush.msra.mxu0 %v372
      %506 = vmatpush.msra.mxu0 %v371
      %507 = vmatpush.msra.mxu0 %v370
      %508 = vmatpush.msra.mxu0 %v369
      %509 = vmatpush.msra.mxu0 %v368
      %510 = vmatpush.msra.mxu0 %v367
      %511 = vmatpush.msra.mxu0 %v366
      %512 = vmatpush.msra.mxu0 %v365
      %513 = vmatpush.msra.mxu0 %v364
      %514 = vmatpush.msra.mxu0 %v363
      %515 = vmatpush.msra.mxu0 %v362
      %516 = vmatpush.msra.mxu0 %v361
      %517 = vmatpush.msra.mxu0 %v360
      %518 = vmatpush.msra.mxu0 %v359
      %519 = vmatmul.f32.gmra.mxu0 %v341
      %v520 = vpop.f32.mrf.mxu0
      %v521 = vadd.f32 0.0, %v520
      %522 = vmatmul.f32.gmra.mxu0 %v350
      %v523 = vpop.f32.mrf.mxu0
      %v524 = vadd.f32 0.0, %v523
      %525 = vdwg.mxu0
      %526 = vmatpush.msra.mxu0 %v390
      %527 = vmatpush.msra.mxu0 %v389
      %528 = vmatpush.msra.mxu0 %v388
      %529 = vmatpush.msra.mxu0 %v387
      %530 = vmatpush.msra.mxu0 %v386
      %531 = vmatpush.msra.mxu0 %v385
      %532 = vmatpush.msra.mxu0 %v384
      %533 = vmatpush.msra.mxu0 %v383
      %534 = vmatpush.msra.mxu0 %v382
      %535 = vmatpush.msra.mxu0 %v381
      %536 = vmatpush.msra.mxu0 %v380
      %537 = vmatpush.msra.mxu0 %v379
      %538 = vmatpush.msra.mxu0 %v378
      %539 = vmatpush.msra.mxu0 %v377
      %540 = vmatpush.msra.mxu0 %v376
      %541 = vmatpush.msra.mxu0 %v375
      %542 = vmatmul.f32.gmra.mxu0 %v342
      %v543 = vpop.f32.mrf.mxu0
      %v544 = vadd.f32 %v521, %v543
      %545 = vmatmul.f32.gmra.mxu0 %v351
      %v546 = vpop.f32.mrf.mxu0
      %v547 = vadd.f32 %v524, %v546
      %548 = vdwg.mxu0
      %549 = vmatpush.msra.mxu0 %v406
      %550 = vmatpush.msra.mxu0 %v405
      %551 = vmatpush.msra.mxu0 %v404
      %552 = vmatpush.msra.mxu0 %v403
      %553 = vmatpush.msra.mxu0 %v402
      %554 = vmatpush.msra.mxu0 %v401
      %555 = vmatpush.msra.mxu0 %v400
      %556 = vmatpush.msra.mxu0 %v399
      %557 = vmatpush.msra.mxu0 %v398
      %558 = vmatpush.msra.mxu0 %v397
      %559 = vmatpush.msra.mxu0 %v396
      %560 = vmatpush.msra.mxu0 %v395
      %561 = vmatpush.msra.mxu0 %v394
      %562 = vmatpush.msra.mxu0 %v393
      %563 = vmatpush.msra.mxu0 %v392
      %564 = vmatpush.msra.mxu0 %v391
      %565 = vmatmul.f32.gmra.mxu0 %v343
      %v566 = vpop.f32.mrf.mxu0
      %v567 = vadd.f32 %v544, %v566
      %568 = vmatmul.f32.gmra.mxu0 %v352
      %v569 = vpop.f32.mrf.mxu0
      %v570 = vadd.f32 %v547, %v569
      %571 = vdwg.mxu0
      %572 = vmatpush.msra.mxu0 %v422
      %573 = vmatpush.msra.mxu0 %v421
      %574 = vmatpush.msra.mxu0 %v420
      %575 = vmatpush.msra.mxu0 %v419
      %576 = vmatpush.msra.mxu0 %v418
      %577 = vmatpush.msra.mxu0 %v417
      %578 = vmatpush.msra.mxu0 %v416
      %579 = vmatpush.msra.mxu0 %v415
      %580 = vmatpush.msra.mxu0 %v414
      %581 = vmatpush.msra.mxu0 %v413
      %582 = vmatpush.msra.mxu0 %v412
      %583 = vmatpush.msra.mxu0 %v411
      %584 = vmatpush.msra.mxu0 %v410
      %585 = vmatpush.msra.mxu0 %v409
      %586 = vmatpush.msra.mxu0 %v408
      %587 = vmatpush.msra.mxu0 %v407
      %588 = vmatmul.f32.gmra.mxu0 %v344
      %v589 = vpop.f32.mrf.mxu0
      %v590 = vadd.f32 %v567, %v589
      %591 = vmatmul.f32.gmra.mxu0 %v353
      %v592 = vpop.f32.mrf.mxu0
      %v593 = vadd.f32 %v570, %v592
      %594 = vdwg.mxu0
      %595 = vmatpush.msra.mxu0 %v438
      %596 = vmatpush.msra.mxu0 %v437
      %597 = vmatpush.msra.mxu0 %v436
      %598 = vmatpush.msra.mxu0 %v435
      %599 = vmatpush.msra.mxu0 %v434
      %600 = vmatpush.msra.mxu0 %v433
      %601 = vmatpush.msra.mxu0 %v432
      %602 = vmatpush.msra.mxu0 %v431
      %603 = vmatpush.msra.mxu0 %v430
      %604 = vmatpush.msra.mxu0 %v429
      %605 = vmatpush.msra.mxu0 %v428
      %606 = vmatpush.msra.mxu0 %v427
      %607 = vmatpush.msra.mxu0 %v426
      %608 = vmatpush.msra.mxu0 %v425
      %609 = vmatpush.msra.mxu0 %v424
      %610 = vmatpush.msra.mxu0 %v423
      %611 = vmatmul.f32.gmra.mxu0 %v345
      %v612 = vpop.f32.mrf.mxu0
      %v613 = vadd.f32 %v590, %v612
      %614 = vmatmul.f32.gmra.mxu0 %v354
      %v615 = vpop.f32.mrf.mxu0
      %v616 = vadd.f32 %v593, %v615
      %617 = vdwg.mxu0
      %618 = vmatpush.msra.mxu0 %v454
      %619 = vmatpush.msra.mxu0 %v453
      %620 = vmatpush.msra.mxu0 %v452
      %621 = vmatpush.msra.mxu0 %v451
      %622 = vmatpush.msra.mxu0 %v450
      %623 = vmatpush.msra.mxu0 %v449
      %624 = vmatpush.msra.mxu0 %v448
      %625 = vmatpush.msra.mxu0 %v447
      %626 = vmatpush.msra.mxu0 %v446
      %627 = vmatpush.msra.mxu0 %v445
      %628 = vmatpush.msra.mxu0 %v444
      %629 = vmatpush.msra.mxu0 %v443
      %630 = vmatpush.msra.mxu0 %v442
      %631 = vmatpush.msra.mxu0 %v441
      %632 = vmatpush.msra.mxu0 %v440
      %633 = vmatpush.msra.mxu0 %v439
      %634 = vmatmul.f32.gmra.mxu0 %v346
      %v635 = vpop.f32.mrf.mxu0
      %v636 = vadd.f32 %v613, %v635
      %637 = vmatmul.f32.gmra.mxu0 %v355
      %v638 = vpop.f32.mrf.mxu0
      %v639 = vadd.f32 %v616, %v638
      %640 = vdwg.mxu0
      %641 = vmatpush.msra.mxu0 %v470
      %642 = vmatpush.msra.mxu0 %v469
      %643 = vmatpush.msra.mxu0 %v468
      %644 = vmatpush.msra.mxu0 %v467
      %645 = vmatpush.msra.mxu0 %v466
      %646 = vmatpush.msra.mxu0 %v465
      %647 = vmatpush.msra.mxu0 %v464
      %648 = vmatpush.msra.mxu0 %v463
      %649 = vmatpush.msra.mxu0 %v462
      %650 = vmatpush.msra.mxu0 %v461
      %651 = vmatpush.msra.mxu0 %v460
      %652 = vmatpush.msra.mxu0 %v459
      %653 = vmatpush.msra.mxu0 %v458
      %654 = vmatpush.msra.mxu0 %v457
      %655 = vmatpush.msra.mxu0 %v456
      %656 = vmatpush.msra.mxu0 %v455
      %657 = vmatmul.f32.gmra.mxu0 %v347
      %v658 = vpop.f32.mrf.mxu0
      %v659 = vadd.f32 %v636, %v658
      %660 = vmatmul.f32.gmra.mxu0 %v356
      %v661 = vpop.f32.mrf.mxu0
      %v662 = vadd.f32 %v639, %v661
      %663 = vdwg.mxu0
      %664 = vmatpush.msra.mxu0 %v486
      %665 = vmatpush.msra.mxu0 %v485
      %666 = vmatpush.msra.mxu0 %v484
      %667 = vmatpush.msra.mxu0 %v483
      %668 = vmatpush.msra.mxu0 %v482
      %669 = vmatpush.msra.mxu0 %v481
      %670 = vmatpush.msra.mxu0 %v480
      %671 = vmatpush.msra.mxu0 %v479
      %672 = vmatpush.msra.mxu0 %v478
      %673 = vmatpush.msra.mxu0 %v477
      %674 = vmatpush.msra.mxu0 %v476
      %675 = vmatpush.msra.mxu0 %v475
      %676 = vmatpush.msra.mxu0 %v474
      %677 = vmatpush.msra.mxu0 %v473
      %678 = vmatpush.msra.mxu0 %v472
      %679 = vmatpush.msra.mxu0 %v471
      %680 = vmatmul.f32.gmra.mxu0 %v348
      %v681 = vpop.f32.mrf.mxu0
      %v682 = vadd.f32 %v659, %v681
      %683 = vmatmul.f32.gmra.mxu0 %v357
      %v684 = vpop.f32.mrf.mxu0
      %v685 = vadd.f32 %v662, %v684
      %686 = vdwg.mxu0
      %687 = vmatpush.msra.mxu0 %v502
      %688 = vmatpush.msra.mxu0 %v501
      %689 = vmatpush.msra.mxu0 %v500
      %690 = vmatpush.msra.mxu0 %v499
      %691 = vmatpush.msra.mxu0 %v498
      %692 = vmatpush.msra.mxu0 %v497
      %693 = vmatpush.msra.mxu0 %v496
      %694 = vmatpush.msra.mxu0 %v495
      %695 = vmatpush.msra.mxu0 %v494
      %696 = vmatpush.msra.mxu0 %v493
      %697 = vmatpush.msra.mxu0 %v492
      %698 = vmatpush.msra.mxu0 %v491
      %699 = vmatpush.msra.mxu0 %v490
      %700 = vmatpush.msra.mxu0 %v489
      %701 = vmatpush.msra.mxu0 %v488
      %702 = vmatpush.msra.mxu0 %v487
      %703 = vmatmul.f32.gmra.mxu0 %v349
      %v704 = vpop.f32.mrf.mxu0
      %v705 = vadd.f32 %v682, %v704
      %706 = vmatmul.f32.gmra.mxu0 %v358
      %v707 = vpop.f32.mrf.mxu0
      %v708 = vadd.f32 %v685, %v707
      %709 = vdwg.mxu0
      %710 = vst [vmem:[%s325] sm:$0xff] %v705
      %711 = vst [vmem:[%s325 + $0x8] sm:$0xff] %v708
      %v712 = vadd.f32 %v705, %v708
      %v713 = vrot.slane %v712, 4
      %v714 = vadd.f32 %v712, %v713
      %v715 = vrot.slane %v714, 2
      %v716 = vadd.f32 %v714, %v715
      %v717 = vrot.slane %v716, 1
      %v718 = vadd.f32 %v716, %v717
      %v719 = vmul.f32 %v705, %v705
      %v720 = vmul.f32 %v708, %v708
      %v721 = vadd.f32 %v719, %v720
      %v722 = vrot.slane %v721, 4
      %v723 = vadd.f32 %v721, %v722
      %v724 = vrot.slane %v723, 2
      %v725 = vadd.f32 %v723, %v724
      %v726 = vrot.slane %v725, 1
      %v727 = vadd.f32 %v725, %v726
      %vm728 = vcmask 1040384
      %v729 = vsel %vm728, %v718, %v727
      %vm730 = vcmask 1041408
      %v731 = vsel %vm730, %v729, 0.0
      %732 = vst [vmem:[%s336] sm:$0xff] %v731
      %v733 = vld [vmem:[%s319] sm:$0xff]
      %v734 = vld [vmem:[%s319 + $0x8] sm:$0xff]
      %v735 = vld [vmem:[%s3] sm:$0xf]
      %vm736 = vcmask 31744
      %v738 = vsel %vm736, %v733, 0
      %v741 = vsel %vm736, %v734, 0
      %vm743 = vcmask 1043456
      %v745 = vsel %vm743, %v735, 0
      %747 = vmatpush.msra.mxu0 0.0
      %748 = vmatpush.msra.mxu0 0.0
      %749 = vmatpush.msra.mxu0 0.0
      %750 = vmatpush.msra.mxu0 0.0
      %751 = vmatpush.msra.mxu0 0.0
      %752 = vmatpush.msra.mxu0 0.0
      %753 = vmatpush.msra.mxu0 0.0
      %754 = vmatpush.msra.mxu0 0.0
      %755 = vmatpush.msra.mxu0 0.0
      %756 = vmatpush.msra.mxu0 0.0
      %757 = vmatpush.msra.mxu0 0.0
      %758 = vmatpush.msra.mxu0 0.0
      %759 = vmatpush.msra.mxu0 0.0
      %760 = vmatpush.msra.mxu0 0.0
      %761 = vmatpush.msra.mxu0 0.0
      %762 = vmatpush.msra.mxu0 %v745
      %763 = vmatmul.f32.gmra.mxu0 %v738
      %v764 = vpop.f32.mrf.mxu0
      %v765 = vadd.f32 0.0, %v764
      %766 = vmatmul.f32.gmra.mxu0 %v741
      %v767 = vpop.f32.mrf.mxu0
      %v768 = vadd.f32 0.0, %v767
      %769 = vdwg.mxu0
      %770 = vst [vmem:[%s331] sm:$0xff] %v765
      %771 = vst [vmem:[%s331 + $0x8] sm:$0xff] %v768
      %v772 = vadd.f32 %v765, %v768
      %v773 = vrot.slane %v772, 4
      %v774 = vadd.f32 %v772, %v773
      %v775 = vrot.slane %v774, 2
      %v776 = vadd.f32 %v774, %v775
      %v777 = vrot.slane %v776, 1
      %v778 = vadd.f32 %v776, %v777
      %v779 = vmul.f32 %v765, %v765
      %v780 = vmul.f32 %v768, %v768
      %v781 = vadd.f32 %v779, %v780
      %v782 = vrot.slane %v781, 4
      %v783 = vadd.f32 %v781, %v782
      %v784 = vrot.slane %v783, 2
      %v785 = vadd.f32 %v783, %v784
      %v786 = vrot.slane %v785, 1
      %v787 = vadd.f32 %v785, %v786
      %v788 = vsel %vm728, %v778, %v787
      %v789 = vsel %vm730, %v788, 0.0
      %790 = vst [vmem:[%s340] sm:$0xff] %v789
      %s791 = smul.u32 2, %s19
      %p792 = scmp.lt.s32.totalorder %s791, 3
      %s793 = scalar_select %p792, %s791, 3
      %s794 = smul.addr %s793, 8
      %s795 = scalar_lea.vmem %s4, %s794
      %s796 = smul.u32 2, %s19
      %p797 = scmp.lt.s32.totalorder %s796, 3
      %s798 = scalar_select %p797, %s796, 3
      %s799 = smul.addr %s798, 8
      %s800 = scalar_lea.vmem %s5, %s799
      %p801 = scmp.lt.s32.totalorder %s19, 1
      %s802 = scalar_select %p801, %s19, 1
      %s803 = smul.addr %s802, 8
      %s804 = scalar_lea.vmem %s6, %s803
      %p805 = scmp.lt.s32.totalorder %s19, 1
      %s806 = scalar_select %p805, %s19, 1
      %s807 = smul.addr %s806, 8
      %s808 = scalar_lea.vmem %s7, %s807
      // Predicated region
      $region37: #{resnet_block_forward.6} parent=35 // pred_check
        %p809 = pneg %p131
      $region38: #{resnet_block_forward.6} parent=35 // pred_check_branch
        %811 = sbr.rel (%p809) target = $region40
      $region39: #{resnet_block_forward.6} parent=35 // pred_region
        %s812 = smul.u32 2, %s19
      $region40: #{resnet_block_forward.6} parent=35 // pred_fallthru
        _
      // Predicated region
      $region41: #{resnet_block_forward.6} parent=35 // pred_check
        %p813 = pneg %p157
      $region42: #{resnet_block_forward.6} parent=35 // pred_check_branch
        %815 = sbr.rel (%p813) target = $region44
      $region43: #{resnet_block_forward.6} parent=35 // pred_region
        %s816 = smul.u32 2, %s19
      $region44: #{resnet_block_forward.6} parent=35 // pred_fallthru
        _
      // Predicated region
      $region45: #{resnet_block_forward.6} parent=35 // pred_check
        %p817 = pneg %p183
      $region46: #{resnet_block_forward.6} parent=35 // pred_check_branch
        %819 = sbr.rel (%p817) target = $region48
      $region47: #{resnet_block_forward.6} parent=35 // pred_region
        _
      $region48: #{resnet_block_forward.6} parent=35 // pred_fallthru
        _
      // Predicated region
      $region49: #{resnet_block_forward.6} parent=35 // pred_check
        %p820 = pneg %p209
      $region50: #{resnet_block_forward.6} parent=35 // pred_check_branch
        %822 = sbr.rel (%p820) target = $region52
      $region51: #{resnet_block_forward.6} parent=35 // pred_region
        _
      $region52: #{resnet_block_forward.6} parent=35 // pred_fallthru
        _
    $region36: #{resnet_block_forward.6} parent=5 // pred_fallthru
      _
    %p823 = scmp.le.s32.totalorder 2, %s14
    // Predicated region
    $region53: #{resnet_block_forward.6} parent=5 // pred_check
      %p824 = pneg %p823
    $region54: #{resnet_block_forward.6} parent=5 // pred_check_branch
      %826 = sbr.rel (%p824) target = $region56
    $region55: #{resnet_block_forward.6} parent=5 // pred_region
      %s827 = ssub.s32 %s14, 2
      // Predicated region
      $region57: #{resnet_block_forward.6} parent=55 // pred_check
        %p828 = pneg %p137
      $region58: #{resnet_block_forward.6} parent=55 // pred_check_branch
        %830 = sbr.rel (%p828) target = $region60
      $region59: #{resnet_block_forward.6} parent=55 // pred_region
        %s831 = smul.u32 2, %s20
        %p832 = scmp.lt.s32.totalorder %s831, 3
        %s833 = scalar_select %p832, %s831, 3
        %s834 = smul.addr %s833, 8
        %s835 = scalar_lea.vmem %s4, %s834
      $region60: #{resnet_block_forward.6} parent=55 // pred_fallthru
        _
      // Predicated region
      $region61: #{resnet_block_forward.6} parent=55 // pred_check
        %p836 = pneg %p163
      $region62: #{resnet_block_forward.6} parent=55 // pred_check_branch
        %838 = sbr.rel (%p836) target = $region64
      $region63: #{resnet_block_forward.6} parent=55 // pred_region
        %s839 = smul.u32 2, %s20
        %p840 = scmp.lt.s32.totalorder %s839, 3
        %s841 = scalar_select %p840, %s839, 3
        %s842 = smul.addr %s841, 8
        %s843 = scalar_lea.vmem %s5, %s842
      $region64: #{resnet_block_forward.6} parent=55 // pred_fallthru
        _
      // Predicated region
      $region65: #{resnet_block_forward.6} parent=55 // pred_check
        %p844 = pneg %p189
      $region66: #{resnet_block_forward.6} parent=55 // pred_check_branch
        %846 = sbr.rel (%p844) target = $region68
      $region67: #{resnet_block_forward.6} parent=55 // pred_region
        %p847 = scmp.lt.s32.totalorder %s20, 1
        %s848 = scalar_select %p847, %s20, 1
        %s849 = smul.addr %s848, 8
        %s850 = scalar_lea.vmem %s6, %s849
      $region68: #{resnet_block_forward.6} parent=55 // pred_fallthru
        _
      // Predicated region
      $region69: #{resnet_block_forward.6} parent=55 // pred_check
        %p851 = pneg %p215
      $region70: #{resnet_block_forward.6} parent=55 // pred_check_branch
        %853 = sbr.rel (%p851) target = $region72
      $region71: #{resnet_block_forward.6} parent=55 // pred_region
        %p854 = scmp.lt.s32.totalorder %s20, 1
        %s855 = scalar_select %p854, %s20, 1
        %s856 = smul.addr %s855, 8
        %s857 = scalar_lea.vmem %s7, %s856
      $region72: #{resnet_block_forward.6} parent=55 // pred_fallthru
        _
    $region56: #{resnet_block_forward.6} parent=5 // pred_fallthru
      _
  $region6: #{resnet_block_forward.6} parent=0 // loop_footer
    %s18 = sadd.s32 1, %s14
  $region7: #{resnet_block_forward.6} parent=0 // loop_footer_branch
    %13 = sbr.rel target = $region3
  $region8: #{resnet_block_forward.6} parent=0 // loop_exit
    _

</llo_original>
